<compile_context>
chip_gen: v7x
topology: tpu7x:2x2x1
jax: 0.10.0
libtpu: 0.0.40
codegen_flags: <defaults>
</compile_context>

<pallas_src>
import jax
import jax.numpy as jnp
from jax.experimental import pallas as pl
from jax.experimental.pallas import tpu as pltpu


# ----------------------------------------------------------------------------
# Generation gating helpers
# ----------------------------------------------------------------------------
def _device_kind():
    try:
        return jax.devices()[0].device_kind.lower()
    except Exception:
        return ""


def _inner_compute_dtype():
    """bf16 inner chain on v6e/v7x (bf16 VPU/EUP); f32 elsewhere (v5e has no bf16 VPU)."""
    kind = _device_kind()
    if ("v6" in kind) or ("v7" in kind) or ("7x" in kind):
        return jnp.bfloat16
    return jnp.float32


def _vmem_limit_bytes():
    kind = _device_kind()
    limit = 48 * 1024 * 1024 if (("v7" in kind) or ("7x" in kind)) else 64 * 1024 * 1024
    try:
        cap = getattr(pltpu.get_tpu_info(), "vmem_capacity_bytes", None)
        if cap:
            limit = min(limit, int(cap) * 3 // 4)
    except Exception:
        pass
    return limit


# ----------------------------------------------------------------------------
# Detection-loss Pallas kernel (S^3 IoU path + dice partial sums, per batch)
# ----------------------------------------------------------------------------
def _make_detection_kernel(inner_dtype):
    def kernel(yt_ref, yp_ref, m_ref, gt_ref, pr_ref, o_ref, acc_iou, area_pr_sc):
        it = pl.program_id(1)
        n_it = pl.num_programs(1)

        @pl.when(it == 0)
        def _init():
            acc_iou[...] = jnp.zeros_like(acc_iou)
            # hoist pred-side invariant: area_pred computed once per batch
            top_pr = pr_ref[0, 0].astype(inner_dtype)
            right_pr = pr_ref[0, 1].astype(inner_dtype)
            bottom_pr = pr_ref[0, 2].astype(inner_dtype)
            left_pr = pr_ref[0, 3].astype(inner_dtype)
            area_pr_sc[...] = (top_pr + bottom_pr) * (right_pr + left_pr)

        # GT geometry rows of this i-tile, over (i, j): (Ti, S)
        top_gt = gt_ref[0, 0].astype(inner_dtype)
        right_gt = gt_ref[0, 1].astype(inner_dtype)
        bottom_gt = gt_ref[0, 2].astype(inner_dtype)
        left_gt = gt_ref[0, 3].astype(inner_dtype)
        # predicted geometry, over (j, k): (S, S)
        top_pr = pr_ref[0, 0].astype(inner_dtype)
        right_pr = pr_ref[0, 1].astype(inner_dtype)
        bottom_pr = pr_ref[0, 2].astype(inner_dtype)
        left_pr = pr_ref[0, 3].astype(inner_dtype)

        area_gt = (top_gt + bottom_gt) * (right_gt + left_gt)          # (Ti, S)

        # broadcast (Ti, S, 1) x (1, S, S) -> (Ti, S, S), exactly like the torch code
        w_int = (jnp.minimum(right_gt[:, :, None], right_pr[None, :, :])
                 + jnp.minimum(left_gt[:, :, None], left_pr[None, :, :]))
        h_int = (jnp.minimum(top_gt[:, :, None], top_pr[None, :, :])
                 + jnp.minimum(bottom_gt[:, :, None], bottom_pr[None, :, :]))
        area_int = w_int * h_int
        area_union = area_gt[:, :, None] + area_pr_sc[...][None, :, :] - area_int
        # -log((area_int + 1) / (1 + area_union)) == log(1 + union) - log(1 + int)
        # (no divide; assumes the geometric distances are non-negative)
        iou = jnp.log(1.0 + area_union) - jnp.log(1.0 + area_int)      # (Ti, S, S)

        # per-(j,k) accumulation: VPU adds only, f32 accumulator, cross-lane reduce
        # deferred to finalize
        acc_iou[...] += jnp.sum(iou.astype(jnp.float32), axis=0)       # (S, S)

        @pl.when(it == n_it - 1)
        def _finalize():
            yt = yt_ref[0]          # (S, S) over (j, k), f32
            yp = yp_ref[0]
            m = m_ref[0]
            w = yt * m
            s_int = jnp.sum(w * yp)
            s_yt = jnp.sum(w)
            s_yp = jnp.sum(yp * m)
            s_iou = jnp.sum(acc_iou[...] * w)
            # single packed (1, 1, 8) output instead of four scalar output pipelines
            lane = jax.lax.broadcasted_iota(jnp.int32, (1, 1, 8), 2)
            packed = (jnp.where(lane == 0, s_int, 0.0)
                      + jnp.where(lane == 1, s_yt, 0.0)
                      + jnp.where(lane == 2, s_yp, 0.0)
                      + jnp.where(lane == 3, s_iou, 0.0))
            o_ref[...] = packed.astype(jnp.float32)

    return kernel


def _pick_tile(S, want):
    for t in (want, 32, 16, 8):
        if t <= S and S % t == 0 and t % 8 == 0:
            return t
    return S


def detection_loss(y_true_clf, y_pred_clf, y_true_reg, y_pred_reg, training_mask,
                   config, block_i=32, inner_dtype=None):
    B, _, S, _ = y_true_clf.shape
    lam_theta = float(config["fots_hyperparameters"]["lam_theta"])
    lam_reg = float(config["fots_hyperparameters"]["lam_reg"])
    f32 = jnp.float32
    if inner_dtype is None:
        inner_dtype = _inner_compute_dtype()

    yt = y_true_clf[:, 0].astype(f32)        # (B, S, S) over (j, k)
    yp = y_pred_clf[:, 0].astype(f32)
    m = training_mask[:, 0].astype(f32)
    # channel-major (lane-dense) geometry blocks; only the 4 distance channels go to the kernel
    gt_geo = jnp.transpose(y_true_reg[..., :4].astype(f32), (0, 3, 1, 2))   # (B, 4, S, S) over (i, j)
    pr_geo = y_pred_reg[:, :4].astype(f32)                                  # (B, 4, S, S) over (j, k)

    ti = _pick_tile(S, block_i)
    n_it = S // ti

    outs = pl.pallas_call(
        _make_detection_kernel(inner_dtype),
        out_shape=jax.ShapeDtypeStruct((B, 1, 8), f32),
        grid_spec=pltpu.PrefetchScalarGridSpec(
            num_scalar_prefetch=0,
            grid=(B, n_it),                                          # i-tile innermost
            in_specs=[
                pl.BlockSpec((1, S, S), lambda b, i: (b, 0, 0)),         # y_true_clf
                pl.BlockSpec((1, S, S), lambda b, i: (b, 0, 0)),         # y_pred_clf
                pl.BlockSpec((1, S, S), lambda b, i: (b, 0, 0)),         # training_mask
                pl.BlockSpec((1, 4, ti, S), lambda b, i: (b, 0, i, 0)),  # GT geo rows (i-tiled)
                pl.BlockSpec((1, 4, S, S), lambda b, i: (b, 0, 0, 0)),   # pred geo
            ],
            out_specs=pl.BlockSpec((1, 1, 8), lambda b, i: (b, 0, 0)),
            scratch_shapes=[pltpu.VMEM((S, S), f32),                 # acc_iou (f32 accumulation)
                            pltpu.VMEM((S, S), inner_dtype)],        # hoisted area_pred
        ),
        compiler_params=pltpu.CompilerParams(
            dimension_semantics=("parallel", "arbitrary"),
            vmem_limit_bytes=_vmem_limit_bytes()),
    )(yt, yp, m, gt_geo, pr_geo)

    parts = outs[:, 0, :]                                            # (B, 8)
    inter_b, syt_b, syp_b, iou_b = parts[:, 0], parts[:, 1], parts[:, 2], parts[:, 3]

    # Angle term: cos(theta_pred - theta_gt) expanded with the exact identity
    # cos(a-b) = cos a cos b + sin a sin b is separable over the (i, j, k) broadcast,
    # so its masked sum reduces to O(B*S^2) work kept off the S^3 kernel path.
    w = yt * m                                   # (B, S, S) over (j, k)
    theta_gt = y_true_reg[..., 4].astype(f32)    # (B, S, S) over (i, j)
    theta_pr = y_pred_reg[:, 4].astype(f32)      # (B, S, S) over (j, k)
    cg, sg = jnp.cos(theta_gt), jnp.sin(theta_gt)
    cp, sp = jnp.cos(theta_pr), jnp.sin(theta_pr)
    sum_w = jnp.sum(w, axis=(1, 2))                              # (B,)
    c_gt = jnp.sum(cg, axis=1)                                   # (B, S) over j
    s_gt = jnp.sum(sg, axis=1)
    a_cos = jnp.sum(cp * w, axis=2)                              # (B, S) over j
    a_sin = jnp.sum(sp * w, axis=2)
    angle_sum = S * sum_w - jnp.sum(c_gt * a_cos + s_gt * a_sin, axis=1)   # (B,)

    eps = 1e-5
    inter = jnp.sum(inter_b)
    union = jnp.sum(syt_b) + jnp.sum(syp_b) + eps
    clf_loss = (1.0 - 2.0 * inter / union) * 0.01                # dice * 0.01
    reg_sum = jnp.sum(iou_b) + lam_theta * jnp.sum(angle_sum)
    reg_mean = reg_sum / float(B * S * S * S)                    # torch.mean over (B,S,S,S)
    return clf_loss + lam_reg * reg_mean


# ----------------------------------------------------------------------------
# Recognition loss (torch.nn.CTCLoss, blank=0, reduction='mean', zero_infinity=True)
# ----------------------------------------------------------------------------
def ctc_loss_mean(log_probs, targets, input_lengths, target_lengths, blank=0):
    # TODO(synk): CTC forward DP kept in plain JAX (lax.scan); the irregular per-label
    # gather recursion has no clean Pallas tiling at these sizes.
    T, N, C = log_probs.shape
    Smax = targets.shape[1]
    L = 2 * Smax + 1
    neg_inf = jnp.float32(-1e30)

    ext = jnp.full((N, L), blank, dtype=jnp.int32)
    ext = ext.at[:, 1::2].set(targets.astype(jnp.int32))
    idx = jnp.arange(L)[None, :]
    ext_m2 = jnp.pad(ext, ((0, 0), (2, 0)), constant_values=blank)[:, :L]
    allow_skip = (idx >= 2) & (ext != blank) & (ext != ext_m2)

    def emit(lp_t):  # (N, C) -> (N, L)
        return jnp.take_along_axis(lp_t, ext, axis=1)

    e0 = emit(log_probs[0])
    alpha0 = jnp.full((N, L), neg_inf)
    alpha0 = alpha0.at[:, 0].set(e0[:, 0])
    alpha0 = alpha0.at[:, 1].set(jnp.where(target_lengths > 0, e0[:, 1], neg_inf))

    def step(alpha, xs):
        t, lp_t = xs
        a1 = jnp.concatenate([jnp.full((N, 1), neg_inf), alpha[:, :-1]], axis=1)
        a2 = jnp.concatenate([jnp.full((N, 2), neg_inf), alpha[:, :-2]], axis=1)
        a2 = jnp.where(allow_skip, a2, neg_inf)
        new = jnp.logaddexp(jnp.logaddexp(alpha, a1), a2) + emit(lp_t)
        new = jnp.where((t < input_lengths)[:, None], new, alpha)
        return new, None

    alpha, _ = jax.lax.scan(step, alpha0, (jnp.arange(1, T), log_probs[1:]))

    last = 2 * target_lengths
    a_blank = jnp.take_along_axis(alpha, last[:, None], axis=1)[:, 0]
    a_label = jnp.take_along_axis(alpha, jnp.maximum(last - 1, 0)[:, None], axis=1)[:, 0]
    a_label = jnp.where(target_lengths > 0, a_label, neg_inf)
    loss = -jnp.logaddexp(a_blank, a_label)
    loss = jnp.where(jnp.isfinite(loss) & (loss < 1e29), loss, 0.0)  # zero_infinity
    loss = loss / jnp.maximum(target_lengths, 1).astype(loss.dtype)  # reduction='mean'
    return jnp.mean(loss)


# ----------------------------------------------------------------------------
# FOTSLoss wrapper
# ----------------------------------------------------------------------------
def fots_loss(y_true_clf, y_pred_clf, y_true_reg, y_pred_reg,
              y_true_recog, y_pred_recog, training_mask, config):
    det = detection_loss(y_true_clf, y_pred_clf, y_true_reg, y_pred_reg, training_mask, config)
    rec = jnp.float32(0.0)
    if y_true_recog is not None:
        rec = ctc_loss_mean(y_pred_recog[0], y_true_recog[0], y_pred_recog[1], y_true_recog[1])
    return det, rec


# Pure-JAX reference of the detection loss (mirrors the torch code) for a sanity check.
def _detection_loss_ref(yt_clf, yp_clf, yt_reg, yp_reg, mask, lam_theta, lam_reg):
    eps = 1e-5
    inter = jnp.sum(yt_clf * yp_clf * mask)
    union = jnp.sum(yt_clf * mask) + jnp.sum(yp_clf * mask) + eps
    clf_loss = (1.0 - 2.0 * inter / union) * 0.01
    top_gt, right_gt, bottom_gt, left_gt, theta_gt = jnp.split(yt_reg, 5, axis=3)
    top_pr, right_pr, bottom_pr, left_pr, theta_pr = jnp.split(yp_reg, 5, axis=1)
    area_gt = (top_gt + bottom_gt) * (right_gt + left_gt)
    area_pr = (top_pr + bottom_pr) * (right_pr + left_pr)
    w_int = jnp.minimum(right_gt, right_pr) + jnp.minimum(left_gt, left_pr)
    h_int = jnp.minimum(top_gt, top_pr) + jnp.minimum(bottom_gt, bottom_pr)
    area_int = w_int * h_int
    area_union = area_gt + area_pr - area_int
    iou_loss = -jnp.log((area_int + 1.0) / (1.0 + area_union))
    angle_loss = 1.0 - jnp.cos(theta_pr - theta_gt)
    reg = iou_loss + lam_theta * angle_loss
    return clf_loss + lam_reg * jnp.mean(reg * yt_clf * mask)


if __name__ == "__main__":
    key = jax.random.PRNGKey(0)
    ks = jax.random.split(key, 8)
    B, S = 2, 16
    config = {"fots_hyperparameters": {"lam_theta": 10.0, "lam_reg": 1.0}}

    y_true_clf = (jax.random.uniform(ks[0], (B, 1, S, S)) > 0.5).astype(jnp.float32)
    y_pred_clf = jax.nn.sigmoid(jax.random.normal(ks[1], (B, 1, S, S))).astype(jnp.float32)
    training_mask = (jax.random.uniform(ks[2], (B, 1, S, S)) > 0.1).astype(jnp.float32)
    y_true_reg = jax.random.uniform(ks[3], (B, S, S, 5), minval=0.0, maxval=4.0).astype(jnp.float32)
    y_pred_reg = jax.random.uniform(ks[4], (B, 5, S, S), minval=0.0, maxval=4.0).astype(jnp.float32)

    # recognition inputs: pred = (log_probs (T,N,C), input_lengths), gt = (targets (N,L), target_lengths)
    T, N, C, Lt = 12, 2, 8, 4
    log_probs = jax.nn.log_softmax(jax.random.normal(ks[5], (T, N, C)), axis=-1).astype(jnp.float32)
    input_lengths = jnp.array([T, T - 2], dtype=jnp.int32)
    targets = jax.random.randint(ks[6], (N, Lt), 1, C).astype(jnp.int32)
    target_lengths = jnp.array([Lt, Lt - 1], dtype=jnp.int32)
    y_pred_recog = (log_probs, input_lengths)
    y_true_recog = (targets, target_lengths)

    det_loss, rec_loss = fots_loss(y_true_clf, y_pred_clf, y_true_reg, y_pred_reg,
                                   y_true_recog, y_pred_recog, training_mask, config)
    jax.block_until_ready((det_loss, rec_loss))

    ref = _detection_loss_ref(y_true_clf, y_pred_clf, y_true_reg, y_pred_reg,
                              training_mask, 10.0, 1.0)
    # bf16 inner chain (v6e/v7x) costs a small amount of IoU-log precision; loosen tolerance there.
    tol = 2e-2 if _inner_compute_dtype() == jnp.bfloat16 else 2e-3
    assert jnp.allclose(det_loss, ref, rtol=tol, atol=tol), (det_loss, ref)
    print("KERNEL_OK")
</pallas_src>

<mosaic_0001>
module attributes {stable_mosaic.version = 11 : i64} {
  func.func @kernel(%arg0: i32, %arg1: i32, %arg2: memref<1x16x16xf32, #tpu.memory_space<vmem>>, %arg3: memref<1x16x16xf32, #tpu.memory_space<vmem>>, %arg4: memref<1x16x16xf32, #tpu.memory_space<vmem>>, %arg5: memref<1x4x16x16xf32, #tpu.memory_space<vmem>>, %arg6: memref<1x4x16x16xf32, #tpu.memory_space<vmem>>, %arg7: memref<1x1x8xf32, #tpu.memory_space<vmem>>, %arg8: memref<16x16xf32, #tpu.memory_space<vmem>>, %arg9: memref<16x16xf32, #tpu.memory_space<vmem>>) attributes {dimension_semantics = [#tpu.dimension_semantics<parallel>, #tpu.dimension_semantics<arbitrary>], iteration_bounds = array<i64: 2, 1>, scalar_prefetch = 0 : i64, scratch_operands = 2 : i64, tpu.core_type = #tpu.core_type<tc>, window_params = [{transform_indices = @transform_0, window_bounds = array<i64: 1, 16, 16>}, {transform_indices = @transform_1, window_bounds = array<i64: 1, 16, 16>}, {transform_indices = @transform_2, window_bounds = array<i64: 1, 16, 16>}, {transform_indices = @transform_3, window_bounds = array<i64: 1, 4, 16, 16>}, {transform_indices = @transform_4, window_bounds = array<i64: 1, 4, 16, 16>}, {transform_indices = @transform_5, window_bounds = array<i64: 1, 1, 8>}]} {
    %c0_i32 = arith.constant 0 : i32
    %0 = arith.cmpi eq, %arg1, %c0_i32 : i32
    %1 = arith.extui %0 : i1 to i32
    %c0_i32_0 = arith.constant 0 : i32
    %2 = arith.cmpi ne, %1, %c0_i32_0 : i32
    scf.if %2 {
      %cst_39 = arith.constant 0.000000e+00 : f32
      %66 = vector.broadcast %cst_39 : f32 to vector<16x16xf32>
      %c0_40 = arith.constant 0 : index
      %c0_41 = arith.constant 0 : index
      %67 = vector.load %arg8[%c0_40, %c0_41] : memref<16x16xf32, #tpu.memory_space<vmem>>, vector<16x16xf32>
      tpu.vector_store %arg8[%c0_40, %c0_41], %66 {strides = array<i32>} : memref<16x16xf32, #tpu.memory_space<vmem>>, vector<16x16xf32>,
      %c0_42 = arith.constant 0 : index
      %c0_43 = arith.constant 0 : index
      %c0_44 = arith.constant 0 : index
      %c0_45 = arith.constant 0 : index
      %68 = vector.load %arg6[%c0_42, %c0_43, %c0_44, %c0_45] : memref<1x4x16x16xf32, #tpu.memory_space<vmem>>, vector<1x1x16x16xf32>
      %69 = vector.shape_cast %68 : vector<1x1x16x16xf32> to vector<16x16xf32>
      %c0_46 = arith.constant 0 : index
      %c1_47 = arith.constant 1 : index
      %c0_48 = arith.constant 0 : index
      %c0_49 = arith.constant 0 : index
      %70 = vector.load %arg6[%c0_46, %c1_47, %c0_48, %c0_49] : memref<1x4x16x16xf32, #tpu.memory_space<vmem>>, vector<1x1x16x16xf32>
      %71 = vector.shape_cast %70 : vector<1x1x16x16xf32> to vector<16x16xf32>
      %c0_50 = arith.constant 0 : index
      %c2_51 = arith.constant 2 : index
      %c0_52 = arith.constant 0 : index
      %c0_53 = arith.constant 0 : index
      %72 = vector.load %arg6[%c0_50, %c2_51, %c0_52, %c0_53] : memref<1x4x16x16xf32, #tpu.memory_space<vmem>>, vector<1x1x16x16xf32>
      %73 = vector.shape_cast %72 : vector<1x1x16x16xf32> to vector<16x16xf32>
      %c0_54 = arith.constant 0 : index
      %c3_55 = arith.constant 3 : index
      %c0_56 = arith.constant 0 : index
      %c0_57 = arith.constant 0 : index
      %74 = vector.load %arg6[%c0_54, %c3_55, %c0_56, %c0_57] : memref<1x4x16x16xf32, #tpu.memory_space<vmem>>, vector<1x1x16x16xf32>
      %75 = vector.shape_cast %74 : vector<1x1x16x16xf32> to vector<16x16xf32>
      %76 = arith.addf %69, %73 : vector<16x16xf32>
      %77 = arith.addf %71, %75 : vector<16x16xf32>
      %78 = arith.mulf %76, %77 : vector<16x16xf32>
      %c0_58 = arith.constant 0 : index
      %c0_59 = arith.constant 0 : index
      %79 = vector.load %arg9[%c0_58, %c0_59] : memref<16x16xf32, #tpu.memory_space<vmem>>, vector<16x16xf32>
      tpu.vector_store %arg9[%c0_58, %c0_59], %78 {strides = array<i32>} : memref<16x16xf32, #tpu.memory_space<vmem>>, vector<16x16xf32>,
    } else {
    }
    %c0 = arith.constant 0 : index
    %c0_1 = arith.constant 0 : index
    %c0_2 = arith.constant 0 : index
    %c0_3 = arith.constant 0 : index
    %3 = vector.load %arg5[%c0, %c0_1, %c0_2, %c0_3] : memref<1x4x16x16xf32, #tpu.memory_space<vmem>>, vector<1x1x16x16xf32>
    %4 = vector.shape_cast %3 : vector<1x1x16x16xf32> to vector<16x16xf32>
    %c0_4 = arith.constant 0 : index
    %c1 = arith.constant 1 : index
    %c0_5 = arith.constant 0 : index
    %c0_6 = arith.constant 0 : index
    %5 = vector.load %arg5[%c0_4, %c1, %c0_5, %c0_6] : memref<1x4x16x16xf32, #tpu.memory_space<vmem>>, vector<1x1x16x16xf32>
    %6 = vector.shape_cast %5 : vector<1x1x16x16xf32> to vector<16x16xf32>
    %c0_7 = arith.constant 0 : index
    %c2 = arith.constant 2 : index
    %c0_8 = arith.constant 0 : index
    %c0_9 = arith.constant 0 : index
    %7 = vector.load %arg5[%c0_7, %c2, %c0_8, %c0_9] : memref<1x4x16x16xf32, #tpu.memory_space<vmem>>, vector<1x1x16x16xf32>
    %8 = vector.shape_cast %7 : vector<1x1x16x16xf32> to vector<16x16xf32>
    %c0_10 = arith.constant 0 : index
    %c3 = arith.constant 3 : index
    %c0_11 = arith.constant 0 : index
    %c0_12 = arith.constant 0 : index
    %9 = vector.load %arg5[%c0_10, %c3, %c0_11, %c0_12] : memref<1x4x16x16xf32, #tpu.memory_space<vmem>>, vector<1x1x16x16xf32>
    %10 = vector.shape_cast %9 : vector<1x1x16x16xf32> to vector<16x16xf32>
    %c0_13 = arith.constant 0 : index
    %c0_14 = arith.constant 0 : index
    %c0_15 = arith.constant 0 : index
    %c0_16 = arith.constant 0 : index
    %11 = vector.load %arg6[%c0_13, %c0_14, %c0_15, %c0_16] : memref<1x4x16x16xf32, #tpu.memory_space<vmem>>, vector<1x1x16x16xf32>
    %12 = vector.shape_cast %11 : vector<1x1x16x16xf32> to vector<16x16xf32>
    %c0_17 = arith.constant 0 : index
    %c1_18 = arith.constant 1 : index
    %c0_19 = arith.constant 0 : index
    %c0_20 = arith.constant 0 : index
    %13 = vector.load %arg6[%c0_17, %c1_18, %c0_19, %c0_20] : memref<1x4x16x16xf32, #tpu.memory_space<vmem>>, vector<1x1x16x16xf32>
    %14 = vector.shape_cast %13 : vector<1x1x16x16xf32> to vector<16x16xf32>
    %c0_21 = arith.constant 0 : index
    %c2_22 = arith.constant 2 : index
    %c0_23 = arith.constant 0 : index
    %c0_24 = arith.constant 0 : index
    %15 = vector.load %arg6[%c0_21, %c2_22, %c0_23, %c0_24] : memref<1x4x16x16xf32, #tpu.memory_space<vmem>>, vector<1x1x16x16xf32>
    %16 = vector.shape_cast %15 : vector<1x1x16x16xf32> to vector<16x16xf32>
    %c0_25 = arith.constant 0 : index
    %c3_26 = arith.constant 3 : index
    %c0_27 = arith.constant 0 : index
    %c0_28 = arith.constant 0 : index
    %17 = vector.load %arg6[%c0_25, %c3_26, %c0_27, %c0_28] : memref<1x4x16x16xf32, #tpu.memory_space<vmem>>, vector<1x1x16x16xf32>
    %18 = vector.shape_cast %17 : vector<1x1x16x16xf32> to vector<16x16xf32>
    %19 = arith.addf %4, %8 : vector<16x16xf32>
    %20 = arith.addf %6, %10 : vector<16x16xf32>
    %21 = arith.mulf %19, %20 : vector<16x16xf32>
    %22 = vector.shape_cast %6 : vector<16x16xf32> to vector<16x16x1xf32>
    %23 = vector.shape_cast %14 : vector<16x16xf32> to vector<1x16x16xf32>
    %24 = vector.broadcast %22 : vector<16x16x1xf32> to vector<16x16x16xf32>
    %25 = vector.broadcast %23 : vector<1x16x16xf32> to vector<16x16x16xf32>
    %26 = arith.minimumf %24, %25 : vector<16x16x16xf32>
    %27 = vector.shape_cast %10 : vector<16x16xf32> to vector<16x16x1xf32>
    %28 = vector.shape_cast %18 : vector<16x16xf32> to vector<1x16x16xf32>
    %29 = vector.broadcast %27 : vector<16x16x1xf32> to vector<16x16x16xf32>
    %30 = vector.broadcast %28 : vector<1x16x16xf32> to vector<16x16x16xf32>
    %31 = arith.minimumf %29, %30 : vector<16x16x16xf32>
    %32 = arith.addf %26, %31 : vector<16x16x16xf32>
    %33 = vector.shape_cast %4 : vector<16x16xf32> to vector<16x16x1xf32>
    %34 = vector.shape_cast %12 : vector<16x16xf32> to vector<1x16x16xf32>
    %35 = vector.broadcast %33 : vector<16x16x1xf32> to vector<16x16x16xf32>
    %36 = vector.broadcast %34 : vector<1x16x16xf32> to vector<16x16x16xf32>
    %37 = arith.minimumf %35, %36 : vector<16x16x16xf32>
    %38 = vector.shape_cast %8 : vector<16x16xf32> to vector<16x16x1xf32>
    %39 = vector.shape_cast %16 : vector<16x16xf32> to vector<1x16x16xf32>
    %40 = vector.broadcast %38 : vector<16x16x1xf32> to vector<16x16x16xf32>
    %41 = vector.broadcast %39 : vector<1x16x16xf32> to vector<16x16x16xf32>
    %42 = arith.minimumf %40, %41 : vector<16x16x16xf32>
    %43 = arith.addf %37, %42 : vector<16x16x16xf32>
    %44 = arith.mulf %32, %43 : vector<16x16x16xf32>
    %45 = vector.shape_cast %21 : vector<16x16xf32> to vector<16x16x1xf32>
    %c0_29 = arith.constant 0 : index
    %c0_30 = arith.constant 0 : index
    %46 = vector.load %arg9[%c0_29, %c0_30] : memref<16x16xf32, #tpu.memory_space<vmem>>, vector<16x16xf32>
    %47 = vector.shape_cast %46 : vector<16x16xf32> to vector<1x16x16xf32>
    %48 = vector.broadcast %45 : vector<16x16x1xf32> to vector<16x16x16xf32>
    %49 = vector.broadcast %47 : vector<1x16x16xf32> to vector<16x16x16xf32>
    %50 = arith.addf %48, %49 : vector<16x16x16xf32>
    %51 = arith.subf %50, %44 : vector<16x16x16xf32>
    %cst = arith.constant 1.000000e+00 : f32
    %52 = vector.broadcast %cst : f32 to vector<16x16x16xf32>
    %53 = arith.addf %52, %51 : vector<16x16x16xf32>
    %54 = math.log %53 : vector<16x16x16xf32>
    %cst_31 = arith.constant 1.000000e+00 : f32
    %55 = vector.broadcast %cst_31 : f32 to vector<16x16x16xf32>
    %56 = arith.addf %55, %44 : vector<16x16x16xf32>
    %57 = math.log %56 : vector<16x16x16xf32>
    %58 = arith.subf %54, %57 : vector<16x16x16xf32>
    %c0_32 = arith.constant 0 : index
    %c0_33 = arith.constant 0 : index
    %59 = vector.load %arg8[%c0_32, %c0_33] : memref<16x16xf32, #tpu.memory_space<vmem>>, vector<16x16xf32>
    %cst_34 = arith.constant dense<0.000000e+00> : vector<16x16xf32>
    %60 = vector.multi_reduction <add>, %58, %cst_34 [0] : vector<16x16x16xf32> to vector<16x16xf32>
    %61 = arith.addf %59, %60 : vector<16x16xf32>
    %c0_35 = arith.constant 0 : index
    %c0_36 = arith.constant 0 : index
    %62 = vector.load %arg8[%c0_35, %c0_36] : memref<16x16xf32, #tpu.memory_space<vmem>>, vector<16x16xf32>
    tpu.vector_store %arg8[%c0_35, %c0_36], %61 {strides = array<i32>} : memref<16x16xf32, #tpu.memory_space<vmem>>, vector<16x16xf32>,
    %c0_i32_37 = arith.constant 0 : i32
    %63 = arith.cmpi eq, %arg1, %c0_i32_37 : i32
    %64 = arith.extui %63 : i1 to i32
    %c0_i32_38 = arith.constant 0 : i32
    %65 = arith.cmpi ne, %64, %c0_i32_38 : i32
    scf.if %65 {
      %c0_39 = arith.constant 0 : index
      %c0_40 = arith.constant 0 : index
      %c0_41 = arith.constant 0 : index
      %66 = vector.load %arg2[%c0_39, %c0_40, %c0_41] : memref<1x16x16xf32, #tpu.memory_space<vmem>>, vector<1x16x16xf32>
      %67 = vector.shape_cast %66 : vector<1x16x16xf32> to vector<16x16xf32>
      %c0_42 = arith.constant 0 : index
      %c0_43 = arith.constant 0 : index
      %c0_44 = arith.constant 0 : index
      %68 = vector.load %arg3[%c0_42, %c0_43, %c0_44] : memref<1x16x16xf32, #tpu.memory_space<vmem>>, vector<1x16x16xf32>
      %69 = vector.shape_cast %68 : vector<1x16x16xf32> to vector<16x16xf32>
      %c0_45 = arith.constant 0 : index
      %c0_46 = arith.constant 0 : index
      %c0_47 = arith.constant 0 : index
      %70 = vector.load %arg4[%c0_45, %c0_46, %c0_47] : memref<1x16x16xf32, #tpu.memory_space<vmem>>, vector<1x16x16xf32>
      %71 = vector.shape_cast %70 : vector<1x16x16xf32> to vector<16x16xf32>
      %72 = arith.mulf %67, %71 : vector<16x16xf32>
      %73 = arith.mulf %72, %69 : vector<16x16xf32>
      %74 = vector.shape_cast %73 : vector<16x16xf32> to vector<1x16x16xf32>
      %cst_48 = arith.constant dense<0.000000e+00> : vector<1xf32>
      %75 = vector.multi_reduction <add>, %74, %cst_48 [1, 2] : vector<1x16x16xf32> to vector<1xf32>
      %76 = vector.shape_cast %75 : vector<1xf32> to vector<1x1x1xf32>
      %77 = vector.extract %76[0, 0, 0] : f32 from vector<1x1x1xf32>
      %78 = vector.shape_cast %72 : vector<16x16xf32> to vector<1x16x16xf32>
      %cst_49 = arith.constant dense<0.000000e+00> : vector<1xf32>
      %79 = vector.multi_reduction <add>, %78, %cst_49 [1, 2] : vector<1x16x16xf32> to vector<1xf32>
      %80 = vector.shape_cast %79 : vector<1xf32> to vector<1x1x1xf32>
      %81 = vector.extract %80[0, 0, 0] : f32 from vector<1x1x1xf32>
      %82 = arith.mulf %69, %71 : vector<16x16xf32>
      %83 = vector.shape_cast %82 : vector<16x16xf32> to vector<1x16x16xf32>
      %cst_50 = arith.constant dense<0.000000e+00> : vector<1xf32>
      %84 = vector.multi_reduction <add>, %83, %cst_50 [1, 2] : vector<1x16x16xf32> to vector<1xf32>
      %85 = vector.shape_cast %84 : vector<1xf32> to vector<1x1x1xf32>
      %86 = vector.extract %85[0, 0, 0] : f32 from vector<1x1x1xf32>
      %c0_51 = arith.constant 0 : index
      %c0_52 = arith.constant 0 : index
      %87 = vector.load %arg8[%c0_51, %c0_52] : memref<16x16xf32, #tpu.memory_space<vmem>>, vector<16x16xf32>
      %88 = arith.mulf %87, %72 : vector<16x16xf32>
      %89 = vector.shape_cast %88 : vector<16x16xf32> to vector<1x16x16xf32>
      %cst_53 = arith.constant dense<0.000000e+00> : vector<1xf32>
      %90 = vector.multi_reduction <add>, %89, %cst_53 [1, 2] : vector<1x16x16xf32> to vector<1xf32>
      %91 = vector.shape_cast %90 : vector<1xf32> to vector<1x1x1xf32>
      %92 = vector.extract %91[0, 0, 0] : f32 from vector<1x1x1xf32>
      %93 = tpu.iota {dimensions = array<i32: 2>} : vector<1x1x8xi32>
      %c0_i32_54 = arith.constant 0 : i32
      %94 = vector.broadcast %c0_i32_54 : i32 to vector<1x1x8xi32>
      %95 = arith.cmpi eq, %93, %94 : vector<1x1x8xi32>
      %cst_55 = arith.constant 0.000000e+00 : f32
      %96 = vector.broadcast %77 : f32 to vector<1x1x8xf32>
      %97 = vector.broadcast %cst_55 : f32 to vector<1x1x8xf32>
      %98 = arith.select %95, %96, %97 : vector<1x1x8xi1>, vector<1x1x8xf32>
      %c1_i32 = arith.constant 1 : i32
      %99 = vector.broadcast %c1_i32 : i32 to vector<1x1x8xi32>
      %100 = arith.cmpi eq, %93, %99 : vector<1x1x8xi32>
      %cst_56 = arith.constant 0.000000e+00 : f32
      %101 = vector.broadcast %81 : f32 to vector<1x1x8xf32>
      %102 = vector.broadcast %cst_56 : f32 to vector<1x1x8xf32>
      %103 = arith.select %100, %101, %102 : vector<1x1x8xi1>, vector<1x1x8xf32>
      %104 = arith.addf %98, %103 : vector<1x1x8xf32>
      %c2_i32 = arith.constant 2 : i32
      %105 = vector.broadcast %c2_i32 : i32 to vector<1x1x8xi32>
      %106 = arith.cmpi eq, %93, %105 : vector<1x1x8xi32>
      %cst_57 = arith.constant 0.000000e+00 : f32
      %107 = vector.broadcast %86 : f32 to vector<1x1x8xf32>
      %108 = vector.broadcast %cst_57 : f32 to vector<1x1x8xf32>
      %109 = arith.select %106, %107, %108 : vector<1x1x8xi1>, vector<1x1x8xf32>
      %110 = arith.addf %104, %109 : vector<1x1x8xf32>
      %c3_i32 = arith.constant 3 : i32
      %111 = vector.broadcast %c3_i32 : i32 to vector<1x1x8xi32>
      %112 = arith.cmpi eq, %93, %111 : vector<1x1x8xi32>
      %cst_58 = arith.constant 0.000000e+00 : f32
      %113 = vector.broadcast %92 : f32 to vector<1x1x8xf32>
      %114 = vector.broadcast %cst_58 : f32 to vector<1x1x8xf32>
      %115 = arith.select %112, %113, %114 : vector<1x1x8xi1>, vector<1x1x8xf32>
      %116 = arith.addf %110, %115 : vector<1x1x8xf32>
      %c0_59 = arith.constant 0 : index
      %c0_60 = arith.constant 0 : index
      %c0_61 = arith.constant 0 : index
      %117 = vector.load %arg7[%c0_59, %c0_60, %c0_61] : memref<1x1x8xf32, #tpu.memory_space<vmem>>, vector<1x1x8xf32>
      tpu.vector_store %arg7[%c0_59, %c0_60, %c0_61], %116 {strides = array<i32>} : memref<1x1x8xf32, #tpu.memory_space<vmem>>, vector<1x1x8xf32>,
    } else {
    }
    return
  }
  func.func @transform_0(%arg0: i32, %arg1: i32) -> (i32, i32, i32) {
    %c0_i32 = arith.constant 0 : i32
    %c0_i32_0 = arith.constant 0 : i32
    %c0_i32_1 = arith.constant 0 : i32
    return %arg0, %c0_i32, %c0_i32_0 : i32, i32, i32
  }
  func.func @transform_1(%arg0: i32, %arg1: i32) -> (i32, i32, i32) {
    %c0_i32 = arith.constant 0 : i32
    %c0_i32_0 = arith.constant 0 : i32
    %c0_i32_1 = arith.constant 0 : i32
    return %arg0, %c0_i32, %c0_i32_0 : i32, i32, i32
  }
  func.func @transform_2(%arg0: i32, %arg1: i32) -> (i32, i32, i32) {
    %c0_i32 = arith.constant 0 : i32
    %c0_i32_0 = arith.constant 0 : i32
    %c0_i32_1 = arith.constant 0 : i32
    return %arg0, %c0_i32, %c0_i32_0 : i32, i32, i32
  }
  func.func @transform_3(%arg0: i32, %arg1: i32) -> (i32, i32, i32, i32) {
    %c0_i32 = arith.constant 0 : i32
    %c0_i32_0 = arith.constant 0 : i32
    %c0_i32_1 = arith.constant 0 : i32
    return %arg0, %c0_i32, %arg1, %c0_i32_0 : i32, i32, i32, i32
  }
  func.func @transform_4(%arg0: i32, %arg1: i32) -> (i32, i32, i32, i32) {
    %c0_i32 = arith.constant 0 : i32
    %c0_i32_0 = arith.constant 0 : i32
    %c0_i32_1 = arith.constant 0 : i32
    %c0_i32_2 = arith.constant 0 : i32
    return %arg0, %c0_i32, %c0_i32_0, %c0_i32_1 : i32, i32, i32, i32
  }
  func.func @transform_5(%arg0: i32, %arg1: i32) -> (i32, i32, i32) {
    %c0_i32 = arith.constant 0 : i32
    %c0_i32_0 = arith.constant 0 : i32
    %c0_i32_1 = arith.constant 0 : i32
    return %arg0, %c0_i32, %c0_i32_0 : i32, i32, i32
  }
}

</mosaic_0001>

<llo_original>
// kernel: tpu_custom_call.1
$region0: #{tpu_custom_call.1}
  #allocation0 [shape = 'u32[]', space=smem, size = 0x4, offset = 0x4, fixed_abs, tag = 'smem constant byte address 0x4 - core index']
  #allocation1 [shape = 'u32[144,128]{1,0:T(1,128)}', space=vmem, size = 0x12000, scoped, tag = 'internal scratch']
  #allocation2 [shape = 'f32[16,16]{1,0:T(8,128)}', space=vmem, size = 0x2000, scoped, tag = 'scratch operand']
  #allocation3 [shape = 'f32[16,16]{1,0:T(8,128)}', space=vmem, size = 0x2000, scoped, tag = 'scratch operand']
  %s0 = inlined_call_operand.hbm [shape: f32[2,16,16], index: 0, kind: input, shape index: {}]
  %s1 = inlined_call_operand.hbm [shape: f32[2,16,16], index: 1, kind: input, shape index: {}]
  %s2 = inlined_call_operand.hbm [shape: f32[2,16,16], index: 2, kind: input, shape index: {}]
  %s3 = inlined_call_operand.hbm [shape: f32[2,4,16,16], index: 3, kind: input, shape index: {}]
  %s4 = inlined_call_operand.hbm [shape: f32[2,4,16,16], index: 4, kind: input, shape index: {}]
  %s5 = inlined_call_operand.hbm [shape: f32[2,1,8], index: 5, kind: output, shape index: {}]
  %s6 = sld [smem:[#allocation0]]
  $region81: #{tpu_custom_call.1} parent=0
    _
  %s8 = ssub.s32 1, %s6
  %s9 = scalar_select 0, %s8, %s6
  $region1: #{tpu_custom_call.1} parent=0
    #allocation4 [shape = 'u8[16384]{0}', space=vmem, size = 0x4000, scoped, tag = 'input window, operand 0']
    #allocation5 [shape = 's32[2]{0}', space=sflag, size = 0x8, scoped, tag = 'scoped memory for tpu_custom_call.1']
    #allocation6 [shape = 's32[2]{0}', space=sflag, size = 0x8, scoped, tag = 'scoped memory for tpu_custom_call.1']
    #allocation7 [shape = 'u8[16384]{0}', space=vmem, size = 0x4000, scoped, tag = 'input window, operand 1']
    #allocation8 [shape = 's32[2]{0}', space=sflag, size = 0x8, scoped, tag = 'scoped memory for tpu_custom_call.1']
    #allocation9 [shape = 'u8[16384]{0}', space=vmem, size = 0x4000, scoped, tag = 'input window, operand 2']
    #allocation10 [shape = 'u8[65536]{0}', space=vmem, size = 0x10000, scoped, tag = 'input window, operand 3']
    #allocation11 [shape = 's32[2]{0}', space=sflag, size = 0x8, scoped, tag = 'scoped memory for tpu_custom_call.1']
    #allocation12 [shape = 'u8[65536]{0}', space=vmem, size = 0x10000, scoped, tag = 'input window, operand 4']
    #allocation13 [shape = 'u8[1024]{0}', space=vmem, size = 0x400, scoped, tag = 'output window, operand 0']
    %10 = vsyncpa [#allocation5], 0
    %s11 = scalar_lea.sflag [#allocation5], 1
    %12 = vsyncpa %s11, 0
    %13 = vsyncpa [#allocation8], 0
    %s14 = scalar_lea.sflag [#allocation8], 1
    %15 = vsyncpa %s14, 0
    %16 = vsyncpa [#allocation11], 0
    %s17 = scalar_lea.sflag [#allocation11], 1
    %18 = vsyncpa %s17, 0
    %19 = vsyncpa [#allocation6], 0
    %s20 = scalar_lea.sflag [#allocation6], 1
    %21 = vsyncpa %s20, 0
    loop: start=0, step=1, limit=4
    $region2: #{tpu_custom_call.1} parent=1 // loop_pre_header
      _
    $region3: #{tpu_custom_call.1} parent=1 // loop_header
      %s23 = sphi 0, %s27
      %p24 = scmp.ge.s32.totalorder %s23, 4
      %s30 = sphi 0, %s42
      %s31 = sphi 0, %s38
      %s32 = sphi 0, %s30
      %s33 = sphi 0, %s31
      %s34 = sphi 0, %s32
      %s35 = sphi 0, %s33
      %s45 = sphi 0, %s47
      %s48 = sphi 0, %s45
      %s49 = sphi 0, %s48
      %s65 = sphi 0, %s49
      %s71 = sphi 0, %s73
      %s74 = sphi 0, %s71
      %s75 = sphi 0, %s74
      %s91 = sphi 0, %s75
      %s97 = sphi 0, %s99
      %s100 = sphi 0, %s97
      %s101 = sphi 0, %s100
      %s117 = sphi 0, %s101
      %s125 = sphi 0, %s127
      %s128 = sphi 0, %s125
      %s129 = sphi 0, %s128
      %s145 = sphi 0, %s129
      %s151 = sphi 0, %s153
      %s154 = sphi 0, %s151
      %s155 = sphi 0, %s154
      %s171 = sphi 0, %s155
      %s177 = sphi 0, %s179
      %s180 = sphi 0, %s177
      %s181 = sphi 0, %s180
      %s197 = sphi 0, %s181
    $region4: #{tpu_custom_call.1} parent=1 // loop_header_branch
      %26 = sbr.rel (%p24) target = $region8
    $region5: #{tpu_custom_call.1} parent=1 // loop_body
      %s28 = ssub.s32 %s23, 1
      %s29 = ssub.s32 %s23, 2
      %s36 = sadd.s32 1, %s31
      %p37 = scmp.ge.s32.totalorder %s36, 1
      %s38 = scalar_select %p37, 0, %s36
      %s39 = sadd.s32 1, %s30
      %s40 = scalar_select %p37, %s39, %s30
      %p41 = scmp.ge.s32.totalorder %s40, 2
      %s42 = scalar_select %p41, 0, %s40
      %s43 = ssub.s32 %s30, %s42
      %p44 = scmp.eq.s32.totalorder %s43, 0
      %s46 = sadd.s32 %s45, 1
      %s47 = scalar_select %p44, %s45, %s46
      %p50 = pneg %p44
      %p51 = scmp.eq.s32.totalorder %s23, 1
      %p52 = por %p50, %p51
      %p53 = scmp.ne.s32.totalorder %s45, %s48
      %p54 = scmp.eq.s32.totalorder %s23, 0
      %p55 = por %p53, %p54
      %p56 = scmp.ne.s32.totalorder %s45, %s48
      %p57 = scmp.eq.s32.totalorder %s28, 1
      %p58 = por %p56, %p57
      %p59 = scmp.ne.s32.totalorder %s48, %s49
      %p60 = scmp.eq.s32.totalorder %s28, 0
      %p61 = por %p59, %p60
      %p62 = scmp.ne.s32.totalorder %s48, %s49
      %p63 = scmp.eq.s32.totalorder %s29, 1
      %p64 = por %p62, %p63
      %p66 = scmp.ne.s32.totalorder %s49, %s65
      %p67 = scmp.eq.s32.totalorder %s29, 0
      %p68 = por %p66, %p67
      %s69 = ssub.s32 %s30, %s42
      %p70 = scmp.eq.s32.totalorder %s69, 0
      %s72 = sadd.s32 %s71, 1
      %s73 = scalar_select %p70, %s71, %s72
      %p76 = pneg %p70
      %p77 = scmp.eq.s32.totalorder %s23, 1
      %p78 = por %p76, %p77
      %p79 = scmp.ne.s32.totalorder %s71, %s74
      %p80 = scmp.eq.s32.totalorder %s23, 0
      %p81 = por %p79, %p80
      %p82 = scmp.ne.s32.totalorder %s71, %s74
      %p83 = scmp.eq.s32.totalorder %s28, 1
      %p84 = por %p82, %p83
      %p85 = scmp.ne.s32.totalorder %s74, %s75
      %p86 = scmp.eq.s32.totalorder %s28, 0
      %p87 = por %p85, %p86
      %p88 = scmp.ne.s32.totalorder %s74, %s75
      %p89 = scmp.eq.s32.totalorder %s29, 1
      %p90 = por %p88, %p89
      %p92 = scmp.ne.s32.totalorder %s75, %s91
      %p93 = scmp.eq.s32.totalorder %s29, 0
      %p94 = por %p92, %p93
      %s95 = ssub.s32 %s30, %s42
      %p96 = scmp.eq.s32.totalorder %s95, 0
      %s98 = sadd.s32 %s97, 1
      %s99 = scalar_select %p96, %s97, %s98
      %p102 = pneg %p96
      %p103 = scmp.eq.s32.totalorder %s23, 1
      %p104 = por %p102, %p103
      %p105 = scmp.ne.s32.totalorder %s97, %s100
      %p106 = scmp.eq.s32.totalorder %s23, 0
      %p107 = por %p105, %p106
      %p108 = scmp.ne.s32.totalorder %s97, %s100
      %p109 = scmp.eq.s32.totalorder %s28, 1
      %p110 = por %p108, %p109
      %p111 = scmp.ne.s32.totalorder %s100, %s101
      %p112 = scmp.eq.s32.totalorder %s28, 0
      %p113 = por %p111, %p112
      %p114 = scmp.ne.s32.totalorder %s100, %s101
      %p115 = scmp.eq.s32.totalorder %s29, 1
      %p116 = por %p114, %p115
      %p118 = scmp.ne.s32.totalorder %s101, %s117
      %p119 = scmp.eq.s32.totalorder %s29, 0
      %p120 = por %p118, %p119
      %s121 = ssub.s32 %s30, %s42
      %s122 = ssub.s32 %s31, %s38
      %s123 = sor.u32 %s121, %s122
      %p124 = scmp.eq.s32.totalorder %s123, 0
      %s126 = sadd.s32 %s125, 1
      %s127 = scalar_select %p124, %s125, %s126
      %p130 = pneg %p124
      %p131 = scmp.eq.s32.totalorder %s23, 1
      %p132 = por %p130, %p131
      %p133 = scmp.ne.s32.totalorder %s125, %s128
      %p134 = scmp.eq.s32.totalorder %s23, 0
      %p135 = por %p133, %p134
      %p136 = scmp.ne.s32.totalorder %s125, %s128
      %p137 = scmp.eq.s32.totalorder %s28, 1
      %p138 = por %p136, %p137
      %p139 = scmp.ne.s32.totalorder %s128, %s129
      %p140 = scmp.eq.s32.totalorder %s28, 0
      %p141 = por %p139, %p140
      %p142 = scmp.ne.s32.totalorder %s128, %s129
      %p143 = scmp.eq.s32.totalorder %s29, 1
      %p144 = por %p142, %p143
      %p146 = scmp.ne.s32.totalorder %s129, %s145
      %p147 = scmp.eq.s32.totalorder %s29, 0
      %p148 = por %p146, %p147
      %s149 = ssub.s32 %s30, %s42
      %p150 = scmp.eq.s32.totalorder %s149, 0
      %s152 = sadd.s32 %s151, 1
      %s153 = scalar_select %p150, %s151, %s152
      %p156 = pneg %p150
      %p157 = scmp.eq.s32.totalorder %s23, 1
      %p158 = por %p156, %p157
      %p159 = scmp.ne.s32.totalorder %s151, %s154
      %p160 = scmp.eq.s32.totalorder %s23, 0
      %p161 = por %p159, %p160
      %p162 = scmp.ne.s32.totalorder %s151, %s154
      %p163 = scmp.eq.s32.totalorder %s28, 1
      %p164 = por %p162, %p163
      %p165 = scmp.ne.s32.totalorder %s154, %s155
      %p166 = scmp.eq.s32.totalorder %s28, 0
      %p167 = por %p165, %p166
      %p168 = scmp.ne.s32.totalorder %s154, %s155
      %p169 = scmp.eq.s32.totalorder %s29, 1
      %p170 = por %p168, %p169
      %p172 = scmp.ne.s32.totalorder %s155, %s171
      %p173 = scmp.eq.s32.totalorder %s29, 0
      %p174 = por %p172, %p173
      %s175 = ssub.s32 %s30, %s42
      %p176 = scmp.eq.s32.totalorder %s175, 0
      %s178 = sadd.s32 %s177, 1
      %s179 = scalar_select %p176, %s177, %s178
      %p182 = pneg %p176
      %p183 = scmp.eq.s32.totalorder %s23, 1
      %p184 = por %p182, %p183
      %p185 = scmp.ne.s32.totalorder %s177, %s180
      %p186 = scmp.eq.s32.totalorder %s23, 0
      %p187 = por %p185, %p186
      %p188 = scmp.ne.s32.totalorder %s177, %s180
      %p189 = scmp.eq.s32.totalorder %s28, 1
      %p190 = por %p188, %p189
      %p191 = scmp.ne.s32.totalorder %s180, %s181
      %p192 = scmp.eq.s32.totalorder %s28, 0
      %p193 = por %p191, %p192
      %p194 = scmp.ne.s32.totalorder %s180, %s181
      %p195 = scmp.eq.s32.totalorder %s29, 1
      %p196 = por %p194, %p195
      %p198 = scmp.ne.s32.totalorder %s181, %s197
      %p199 = scmp.eq.s32.totalorder %s29, 0
      %p200 = por %p198, %p199
      %p201 = scmp.le.s32.totalorder 1, %s23
      %p202 = scmp.lt.s32.totalorder %s23, 3
      %p203 = pnand %p201, %p202
      %p204 = pneg %p203
      // Predicated region
      $region9: #{tpu_custom_call.1} parent=5 // pred_check
        _
      $region10: #{tpu_custom_call.1} parent=5 // pred_check_branch
        %206 = sbr.rel (%p203) target = $region12
      $region11: #{tpu_custom_call.1} parent=5 // pred_region
        %s207 = ssub.s32 %s23, 1
      $region12: #{tpu_custom_call.1} parent=5 // pred_fallthru
        _
      %p208 = scmp.lt.s32.totalorder %s23, 2
      // Predicated region
      $region13: #{tpu_custom_call.1} parent=5 // pred_check
        %p209 = pneg %p208
      $region14: #{tpu_custom_call.1} parent=5 // pred_check_branch
        %211 = sbr.rel (%p209) target = $region16
      $region15: #{tpu_custom_call.1} parent=5 // pred_region
        // Predicated region
        $region17: #{tpu_custom_call.1} parent=15 // pred_check
          %p212 = pneg %p55
        $region18: #{tpu_custom_call.1} parent=15 // pred_check_branch
          %214 = sbr.rel (%p212) target = $region20
        $region19: #{tpu_custom_call.1} parent=15 // pred_region
          %s215 = sand.u32 %s45, 1
          %s216 = scalar_lea.sflag [#allocation5], %s215
          %s217 = sand.u32 %s45, 1
          %s218 = smul.addr %s217, 16
          %s219 = scalar_lea.vmem [#allocation4], %s218
          %s221 = ssub.s32 256, 256
          %222 = vsyncadd %s216, %s221
          %s223 = smul.addr %s30, 2
          %s224 = smul.addr %s223, 128
          %s225 = scalar_lea.hbm %s0, %s224
          %s226 = sshll.u32 %s219, 4
          %s227 = int_to_ptr.vmem [resolvable:$true] %s226
          %232 = dma.hbm_to_vmem [thread:$0]  %s225, 256, %s227, %s216, 128, 128, 8
        $region20: #{tpu_custom_call.1} parent=15 // pred_fallthru
          _
        // Predicated region
        $region21: #{tpu_custom_call.1} parent=15 // pred_check
          %p233 = pneg %p81
        $region22: #{tpu_custom_call.1} parent=15 // pred_check_branch
          %235 = sbr.rel (%p233) target = $region24
        $region23: #{tpu_custom_call.1} parent=15 // pred_region
          %s236 = sand.u32 %s23, 1
          %s237 = scalar_lea.sflag [#allocation8], %s236
          %s238 = sand.u32 %s71, 1
          %s239 = smul.addr %s238, 16
          %s240 = scalar_lea.vmem [#allocation7], %s239
          %s242 = ssub.s32 256, 256
          %243 = vsyncadd %s237, %s242
          %s244 = smul.addr %s30, 2
          %s245 = smul.addr %s244, 128
          %s246 = scalar_lea.hbm %s1, %s245
          %s247 = sshll.u32 %s240, 4
          %s248 = int_to_ptr.vmem [resolvable:$true] %s247
          %253 = dma.hbm_to_vmem [thread:$0]  %s246, 256, %s248, %s237, 128, 128, 8
        $region24: #{tpu_custom_call.1} parent=15 // pred_fallthru
          _
        // Predicated region
        $region25: #{tpu_custom_call.1} parent=15 // pred_check
          %p254 = pneg %p107
        $region26: #{tpu_custom_call.1} parent=15 // pred_check_branch
          %256 = sbr.rel (%p254) target = $region28
        $region27: #{tpu_custom_call.1} parent=15 // pred_region
          %s257 = sand.u32 %s23, 1
          %s258 = scalar_lea.sflag [#allocation8], %s257
          %s259 = sand.u32 %s97, 1
          %s260 = smul.addr %s259, 16
          %s261 = scalar_lea.vmem [#allocation9], %s260
          %s263 = ssub.s32 256, 256
          %264 = vsyncadd %s258, %s263
          %s265 = smul.addr %s30, 2
          %s266 = smul.addr %s265, 128
          %s267 = scalar_lea.hbm %s2, %s266
          %s268 = sshll.u32 %s261, 4
          %s269 = int_to_ptr.vmem [resolvable:$true] %s268
          %274 = dma.hbm_to_vmem [thread:$0]  %s267, 256, %s269, %s258, 128, 128, 8
        $region28: #{tpu_custom_call.1} parent=15 // pred_fallthru
          _
        // Predicated region
        $region29: #{tpu_custom_call.1} parent=15 // pred_check
          %p275 = pneg %p135
        $region30: #{tpu_custom_call.1} parent=15 // pred_check_branch
          %277 = sbr.rel (%p275) target = $region32
        $region31: #{tpu_custom_call.1} parent=15 // pred_region
          %s278 = sand.u32 %s23, 1
          %s279 = scalar_lea.sflag [#allocation11], %s278
          %s280 = sand.u32 %s125, 1
          %s281 = smul.addr %s280, 64
          %s282 = scalar_lea.vmem [#allocation10], %s281
          %s283 = smul.u32 2, %s31
          %s285 = ssub.s32 1024, 1024
          %286 = vsyncadd %s279, %s285
          %s287 = smul.addr %s30, 8
          %s288 = sadd.s32 %s283, %s287
          %s289 = smul.addr %s288, 128
          %s290 = scalar_lea.hbm %s3, %s289
          %s291 = sshll.u32 %s282, 4
          %s292 = int_to_ptr.vmem [resolvable:$true] %s291
          %297 = dma.hbm_to_vmem [thread:$0]  %s290, 1024, %s292, %s279, 128, 128, 8
        $region32: #{tpu_custom_call.1} parent=15 // pred_fallthru
          _
        // Predicated region
        $region33: #{tpu_custom_call.1} parent=15 // pred_check
          %p298 = pneg %p161
        $region34: #{tpu_custom_call.1} parent=15 // pred_check_branch
          %300 = sbr.rel (%p298) target = $region36
        $region35: #{tpu_custom_call.1} parent=15 // pred_region
          %s301 = sand.u32 %s23, 1
          %s302 = scalar_lea.sflag [#allocation11], %s301
          %s303 = sand.u32 %s151, 1
          %s304 = smul.addr %s303, 64
          %s305 = scalar_lea.vmem [#allocation12], %s304
          %s307 = ssub.s32 1024, 1024
          %308 = vsyncadd %s302, %s307
          %s309 = smul.addr %s30, 8
          %s310 = smul.addr %s309, 128
          %s311 = scalar_lea.hbm %s4, %s310
          %s312 = sshll.u32 %s305, 4
          %s313 = int_to_ptr.vmem [resolvable:$true] %s312
          %318 = dma.hbm_to_vmem [thread:$0]  %s311, 1024, %s313, %s302, 128, 128, 8
        $region36: #{tpu_custom_call.1} parent=15 // pred_fallthru
          _
      $region16: #{tpu_custom_call.1} parent=5 // pred_fallthru
        _
      %p319 = scmp.le.s32.totalorder 1, %s23
      %p320 = scmp.lt.s32.totalorder %s23, 3
      %p321 = pnand %p319, %p320
      %p322 = pneg %p321
      // Predicated region
      $region37: #{tpu_custom_call.1} parent=5 // pred_check
        _
      $region38: #{tpu_custom_call.1} parent=5 // pred_check_branch
        %324 = sbr.rel (%p321) target = $region40
      $region39: #{tpu_custom_call.1} parent=5 // pred_region
        %s325 = ssub.s32 %s23, 1
        %s326 = sand.u32 %s48, 1
        %s327 = scalar_lea.sflag [#allocation5], %s326
        %s328 = sand.u32 %s48, 1
        %s329 = smul.addr %s328, 16
        %s330 = scalar_lea.vmem [#allocation4], %s329
        // Predicated region
        $region41: #{tpu_custom_call.1} parent=39 // pred_check
          %p331 = pneg %p61
        $region42: #{tpu_custom_call.1} parent=39 // pred_check_branch
          %333 = sbr.rel (%p331) target = $region44
        $region43: #{tpu_custom_call.1} parent=39 // pred_region
          %334 = dma.done %s327, 256
        $region44: #{tpu_custom_call.1} parent=39 // pred_fallthru
          _
        %s335 = sand.u32 %s28, 1
        %s336 = scalar_lea.sflag [#allocation8], %s335
        %s337 = sand.u32 %s74, 1
        %s338 = smul.addr %s337, 16
        %s339 = scalar_lea.vmem [#allocation7], %s338
        // Predicated region
        $region45: #{tpu_custom_call.1} parent=39 // pred_check
          %p340 = pneg %p87
        $region46: #{tpu_custom_call.1} parent=39 // pred_check_branch
          %342 = sbr.rel (%p340) target = $region48
        $region47: #{tpu_custom_call.1} parent=39 // pred_region
          %343 = dma.done %s336, 256
        $region48: #{tpu_custom_call.1} parent=39 // pred_fallthru
          _
        %s344 = sand.u32 %s28, 1
        %s345 = scalar_lea.sflag [#allocation8], %s344
        %s346 = sand.u32 %s100, 1
        %s347 = smul.addr %s346, 16
        %s348 = scalar_lea.vmem [#allocation9], %s347
        // Predicated region
        $region49: #{tpu_custom_call.1} parent=39 // pred_check
          %p349 = pneg %p113
        $region50: #{tpu_custom_call.1} parent=39 // pred_check_branch
          %351 = sbr.rel (%p349) target = $region52
        $region51: #{tpu_custom_call.1} parent=39 // pred_region
          %352 = dma.done %s345, 256
        $region52: #{tpu_custom_call.1} parent=39 // pred_fallthru
          _
        %s353 = sand.u32 %s28, 1
        %s354 = scalar_lea.sflag [#allocation11], %s353
        %s355 = sand.u32 %s128, 1
        %s356 = smul.addr %s355, 64
        %s357 = scalar_lea.vmem [#allocation10], %s356
        // Predicated region
        $region53: #{tpu_custom_call.1} parent=39 // pred_check
          %p358 = pneg %p141
        $region54: #{tpu_custom_call.1} parent=39 // pred_check_branch
          %360 = sbr.rel (%p358) target = $region56
        $region55: #{tpu_custom_call.1} parent=39 // pred_region
          %361 = dma.done %s354, 1024
        $region56: #{tpu_custom_call.1} parent=39 // pred_fallthru
          _
        %s362 = sand.u32 %s28, 1
        %s363 = scalar_lea.sflag [#allocation11], %s362
        %s364 = sand.u32 %s154, 1
        %s365 = smul.addr %s364, 64
        %s366 = scalar_lea.vmem [#allocation12], %s365
        // Predicated region
        $region57: #{tpu_custom_call.1} parent=39 // pred_check
          %p367 = pneg %p167
        $region58: #{tpu_custom_call.1} parent=39 // pred_check_branch
          %369 = sbr.rel (%p367) target = $region60
        $region59: #{tpu_custom_call.1} parent=39 // pred_region
          %370 = dma.done %s363, 1024
        $region60: #{tpu_custom_call.1} parent=39 // pred_fallthru
          _
        %s371 = sand.u32 %s48, 1
        %s372 = scalar_lea.sflag [#allocation5], %s371
        %s373 = sand.u32 %s48, 1
        %s374 = smul.addr %s373, 16
        %s375 = scalar_lea.vmem [#allocation4], %s374
        %p376 = pneg %p61
        %p377 = pneg %p58
        %s378 = sand.u32 %s28, 1
        %s379 = scalar_lea.sflag [#allocation8], %s378
        %s380 = sand.u32 %s74, 1
        %s381 = smul.addr %s380, 16
        %s382 = scalar_lea.vmem [#allocation7], %s381
        %p383 = pneg %p87
        %p384 = pneg %p84
        %s385 = sand.u32 %s28, 1
        %s386 = scalar_lea.sflag [#allocation8], %s385
        %s387 = sand.u32 %s100, 1
        %s388 = smul.addr %s387, 16
        %s389 = scalar_lea.vmem [#allocation9], %s388
        %p390 = pneg %p113
        %p391 = pneg %p110
        %s392 = sand.u32 %s28, 1
        %s393 = scalar_lea.sflag [#allocation11], %s392
        %s394 = sand.u32 %s128, 1
        %s395 = smul.addr %s394, 64
        %s396 = scalar_lea.vmem [#allocation10], %s395
        %p397 = pneg %p141
        %p398 = pneg %p138
        %s399 = sand.u32 %s28, 1
        %s400 = scalar_lea.sflag [#allocation11], %s399
        %s401 = sand.u32 %s154, 1
        %s402 = smul.addr %s401, 64
        %s403 = scalar_lea.vmem [#allocation12], %s402
        %p404 = pneg %p167
        %p405 = pneg %p164
        %p406 = pneg %p193
        %p407 = pneg %p190
        %s408 = sand.u32 %s180, 1
        %s409 = scalar_lea.sflag [#allocation6], %s408
        %s410 = sand.u32 %s180, 1
        %s411 = scalar_lea.vmem [#allocation13], %s410
        %s412 = smul.u32 2, %s33
        %p413 = scmp.eq.s32.totalorder %s33, 0
        // Predicated region
        $region61: #{tpu_custom_call.1} parent=39 // pred_check
          %p414 = pneg %p413
        $region62: #{tpu_custom_call.1} parent=39 // pred_check_branch
          %416 = sbr.rel (%p414) target = $region64
        $region63: #{tpu_custom_call.1} parent=39 // pred_region
          %vm417 = vcmask 130048
          %418 = vst.msk [vmem:[#allocation2] sm:$0xff] %vm417, 0.0
          %419 = vst.msk [vmem:[#allocation2 + $0x8] sm:$0xff] %vm417, 0.0
          %v420 = vld [vmem:[%s366] sm:$0xff]
          %v421 = vld [vmem:[%s366 + $0x8] sm:$0xff]
          %s422 = scalar_lea.vmem %s366, 16 [#allocation12]
          %v423 = vld [vmem:[%s422] sm:$0xff]
          %v424 = vld [vmem:[%s422 + $0x8] sm:$0xff]
          %s425 = scalar_lea.vmem %s366, 32 [#allocation12]
          %v426 = vld [vmem:[%s425] sm:$0xff]
          %v427 = vld [vmem:[%s425 + $0x8] sm:$0xff]
          %s428 = scalar_lea.vmem %s366, 48 [#allocation12]
          %v429 = vld [vmem:[%s428] sm:$0xff]
          %v430 = vld [vmem:[%s428 + $0x8] sm:$0xff]
          %v431 = vadd.f32 %v420, %v426
          %v432 = vadd.f32 %v421, %v427
          %v433 = vadd.f32 %v423, %v429
          %v434 = vadd.f32 %v424, %v430
          %v435 = vmul.f32 %v431, %v433
          %v436 = vmul.f32 %v432, %v434
          %437 = vst.msk [vmem:[#allocation3] sm:$0xff] %vm417, %v435
          %438 = vst.msk [vmem:[#allocation3 + $0x8] sm:$0xff] %vm417, %v436
        $region64: #{tpu_custom_call.1} parent=39 // pred_fallthru
          _
        %v439 = vld [vmem:[%s357] sm:$0xff]
        %v440 = vld [vmem:[%s357 + $0x8] sm:$0xff]
        %s441 = scalar_lea.vmem %s357, 16 [#allocation10]
        %v442 = vld [vmem:[%s441] sm:$0xff]
        %v443 = vld [vmem:[%s441 + $0x8] sm:$0xff]
        %s444 = scalar_lea.vmem %s357, 32 [#allocation10]
        %v445 = vld [vmem:[%s444] sm:$0xff]
        %v446 = vld [vmem:[%s444 + $0x8] sm:$0xff]
        %s447 = scalar_lea.vmem %s357, 48 [#allocation10]
        %v448 = vld [vmem:[%s447] sm:$0xff]
        %v449 = vld [vmem:[%s447 + $0x8] sm:$0xff]
        %v450 = vld [vmem:[%s366] sm:$0xff]
        %v451 = vld [vmem:[%s366 + $0x8] sm:$0xff]
        %s452 = scalar_lea.vmem %s366, 16 [#allocation12]
        %v453 = vld [vmem:[%s452] sm:$0xff]
        %v454 = vld [vmem:[%s452 + $0x8] sm:$0xff]
        %s455 = scalar_lea.vmem %s366, 32 [#allocation12]
        %v456 = vld [vmem:[%s455] sm:$0xff]
        %v457 = vld [vmem:[%s455 + $0x8] sm:$0xff]
        %s458 = scalar_lea.vmem %s366, 48 [#allocation12]
        %v459 = vld [vmem:[%s458] sm:$0xff]
        %v460 = vld [vmem:[%s458 + $0x8] sm:$0xff]
        %v461 = vadd.f32 %v439, %v445
        %v462 = vadd.f32 %v440, %v446
        %v463 = vadd.f32 %v442, %v448
        %v464 = vadd.f32 %v443, %v449
        %v465 = vmul.f32 %v461, %v463
        %v466 = vmul.f32 %v462, %v464
        %v467 = vlaneseq
        %v468 = vshrl.u32 %v467, 7
        %v469 = vsub.s32 0, %v468
        %v470 = vrot.slane %v442, %v469
        %472 = vbcast.lane.b32.xlu0 %v470, 256
        %v473 = vpop.permute.xlu0 %472
        %s475 = sor.u32 256, 8
        %476 = vbcast.lane.b32.xlu0 %v470, %s475
        %v477 = vpop.permute.xlu0 %476
        %v478 = vlaneseq
        %v479 = vshrl.u32 %v478, 7
        %v480 = vsub.s32 1, %v479
        %v481 = vrot.slane %v442, %v480
        %483 = vbcast.lane.b32.xlu0 %v481, 256
        %v484 = vpop.permute.xlu0 %483
        %s486 = sor.u32 256, 8
        %487 = vbcast.lane.b32.xlu0 %v481, %s486
        %v488 = vpop.permute.xlu0 %487
        %v489 = vlaneseq
        %v490 = vshrl.u32 %v489, 7
        %v491 = vsub.s32 2, %v490
        %v492 = vrot.slane %v442, %v491
        %494 = vbcast.lane.b32.xlu0 %v492, 256
        %v495 = vpop.permute.xlu0 %494
        %s497 = sor.u32 256, 8
        %498 = vbcast.lane.b32.xlu0 %v492, %s497
        %v499 = vpop.permute.xlu0 %498
        %v500 = vlaneseq
        %v501 = vshrl.u32 %v500, 7
        %v502 = vsub.s32 3, %v501
        %v503 = vrot.slane %v442, %v502
        %505 = vbcast.lane.b32.xlu0 %v503, 256
        %v506 = vpop.permute.xlu0 %505
        %s508 = sor.u32 256, 8
        %509 = vbcast.lane.b32.xlu0 %v503, %s508
        %v510 = vpop.permute.xlu0 %509
        %v511 = vlaneseq
        %v512 = vshrl.u32 %v511, 7
        %v513 = vsub.s32 4, %v512
        %v514 = vrot.slane %v442, %v513
        %516 = vbcast.lane.b32.xlu0 %v514, 256
        %v517 = vpop.permute.xlu0 %516
        %s519 = sor.u32 256, 8
        %520 = vbcast.lane.b32.xlu0 %v514, %s519
        %v521 = vpop.permute.xlu0 %520
        %v522 = vlaneseq
        %v523 = vshrl.u32 %v522, 7
        %v524 = vsub.s32 5, %v523
        %v525 = vrot.slane %v442, %v524
        %527 = vbcast.lane.b32.xlu0 %v525, 256
        %v528 = vpop.permute.xlu0 %527
        %s530 = sor.u32 256, 8
        %531 = vbcast.lane.b32.xlu0 %v525, %s530
        %v532 = vpop.permute.xlu0 %531
        %v533 = vlaneseq
        %v534 = vshrl.u32 %v533, 7
        %v535 = vsub.s32 6, %v534
        %v536 = vrot.slane %v442, %v535
        %538 = vbcast.lane.b32.xlu0 %v536, 256
        %v539 = vpop.permute.xlu0 %538
        %s541 = sor.u32 256, 8
        %542 = vbcast.lane.b32.xlu0 %v536, %s541
        %v543 = vpop.permute.xlu0 %542
        %v544 = vlaneseq
        %v545 = vshrl.u32 %v544, 7
        %v546 = vsub.s32 7, %v545
        %v547 = vrot.slane %v442, %v546
        %549 = vbcast.lane.b32.xlu0 %v547, 256
        %v550 = vpop.permute.xlu0 %549
        %s552 = sor.u32 256, 8
        %553 = vbcast.lane.b32.xlu0 %v547, %s552
        %v554 = vpop.permute.xlu0 %553
        %v555 = vlaneseq
        %v556 = vshrl.u32 %v555, 7
        %v557 = vsub.s32 0, %v556
        %v558 = vrot.slane %v443, %v557
        %560 = vbcast.lane.b32.xlu0 %v558, 256
        %v561 = vpop.permute.xlu0 %560
        %s563 = sor.u32 256, 8
        %564 = vbcast.lane.b32.xlu0 %v558, %s563
        %v565 = vpop.permute.xlu0 %564
        %v566 = vlaneseq
        %v567 = vshrl.u32 %v566, 7
        %v568 = vsub.s32 1, %v567
        %v569 = vrot.slane %v443, %v568
        %571 = vbcast.lane.b32.xlu0 %v569, 256
        %v572 = vpop.permute.xlu0 %571
        %s574 = sor.u32 256, 8
        %575 = vbcast.lane.b32.xlu0 %v569, %s574
        %v576 = vpop.permute.xlu0 %575
        %v577 = vlaneseq
        %v578 = vshrl.u32 %v577, 7
        %v579 = vsub.s32 2, %v578
        %v580 = vrot.slane %v443, %v579
        %582 = vbcast.lane.b32.xlu0 %v580, 256
        %v583 = vpop.permute.xlu0 %582
        %s585 = sor.u32 256, 8
        %586 = vbcast.lane.b32.xlu0 %v580, %s585
        %v587 = vpop.permute.xlu0 %586
        %v588 = vlaneseq
        %v589 = vshrl.u32 %v588, 7
        %v590 = vsub.s32 3, %v589
        %v591 = vrot.slane %v443, %v590
        %593 = vbcast.lane.b32.xlu0 %v591, 256
        %v594 = vpop.permute.xlu0 %593
        %s596 = sor.u32 256, 8
        %597 = vbcast.lane.b32.xlu0 %v591, %s596
        %v598 = vpop.permute.xlu0 %597
        %v599 = vlaneseq
        %v600 = vshrl.u32 %v599, 7
        %v601 = vsub.s32 4, %v600
        %v602 = vrot.slane %v443, %v601
        %604 = vbcast.lane.b32.xlu0 %v602, 256
        %v605 = vpop.permute.xlu0 %604
        %s607 = sor.u32 256, 8
        %608 = vbcast.lane.b32.xlu0 %v602, %s607
        %v609 = vpop.permute.xlu0 %608
        %v610 = vlaneseq
        %v611 = vshrl.u32 %v610, 7
        %v612 = vsub.s32 5, %v611
        %v613 = vrot.slane %v443, %v612
        %615 = vbcast.lane.b32.xlu0 %v613, 256
        %v616 = vpop.permute.xlu0 %615
        %s618 = sor.u32 256, 8
        %619 = vbcast.lane.b32.xlu0 %v613, %s618
        %v620 = vpop.permute.xlu0 %619
        %v621 = vlaneseq
        %v622 = vshrl.u32 %v621, 7
        %v623 = vsub.s32 6, %v622
        %v624 = vrot.slane %v443, %v623
        %626 = vbcast.lane.b32.xlu0 %v624, 256
        %v627 = vpop.permute.xlu0 %626
        %s629 = sor.u32 256, 8
        %630 = vbcast.lane.b32.xlu0 %v624, %s629
        %v631 = vpop.permute.xlu0 %630
        %v632 = vlaneseq
        %v633 = vshrl.u32 %v632, 7
        %v634 = vsub.s32 7, %v633
        %v635 = vrot.slane %v443, %v634
        %637 = vbcast.lane.b32.xlu0 %v635, 256
        %v638 = vpop.permute.xlu0 %637
        %s640 = sor.u32 256, 8
        %641 = vbcast.lane.b32.xlu0 %v635, %s640
        %v642 = vpop.permute.xlu0 %641
        %v643 = vmin.f32 %v473, %v453
        %v644 = vmin.f32 %v477, %v454
        %v645 = vmin.f32 %v484, %v453
        %v646 = vmin.f32 %v488, %v454
        %v647 = vmin.f32 %v495, %v453
        %v648 = vmin.f32 %v499, %v454
        %v649 = vmin.f32 %v506, %v453
        %v650 = vmin.f32 %v510, %v454
        %v651 = vmin.f32 %v517, %v453
        %v652 = vmin.f32 %v521, %v454
        %v653 = vmin.f32 %v528, %v453
        %v654 = vmin.f32 %v532, %v454
        %v655 = vmin.f32 %v539, %v453
        %v656 = vmin.f32 %v543, %v454
        %v657 = vmin.f32 %v550, %v453
        %v658 = vmin.f32 %v554, %v454
        %v659 = vmin.f32 %v561, %v453
        %v660 = vmin.f32 %v565, %v454
        %v661 = vmin.f32 %v572, %v453
        %v662 = vmin.f32 %v576, %v454
        %v663 = vmin.f32 %v583, %v453
        %v664 = vmin.f32 %v587, %v454
        %v665 = vmin.f32 %v594, %v453
        %v666 = vmin.f32 %v598, %v454
        %v667 = vmin.f32 %v605, %v453
        %v668 = vmin.f32 %v609, %v454
        %v669 = vmin.f32 %v616, %v453
        %v670 = vmin.f32 %v620, %v454
        %v671 = vmin.f32 %v627, %v453
        %v672 = vmin.f32 %v631, %v454
        %v673 = vmin.f32 %v638, %v453
        %v674 = vmin.f32 %v642, %v454
        %v675 = vlaneseq
        %v676 = vshrl.u32 %v675, 7
        %v677 = vsub.s32 0, %v676
        %v678 = vrot.slane %v448, %v677
        %680 = vbcast.lane.b32.xlu0 %v678, 256
        %v681 = vpop.permute.xlu0 %680
        %s683 = sor.u32 256, 8
        %684 = vbcast.lane.b32.xlu0 %v678, %s683
        %v685 = vpop.permute.xlu0 %684
        %v686 = vlaneseq
        %v687 = vshrl.u32 %v686, 7
        %v688 = vsub.s32 1, %v687
        %v689 = vrot.slane %v448, %v688
        %691 = vbcast.lane.b32.xlu0 %v689, 256
        %v692 = vpop.permute.xlu0 %691
        %s694 = sor.u32 256, 8
        %695 = vbcast.lane.b32.xlu0 %v689, %s694
        %v696 = vpop.permute.xlu0 %695
        %v697 = vlaneseq
        %v698 = vshrl.u32 %v697, 7
        %v699 = vsub.s32 2, %v698
        %v700 = vrot.slane %v448, %v699
        %702 = vbcast.lane.b32.xlu0 %v700, 256
        %v703 = vpop.permute.xlu0 %702
        %s705 = sor.u32 256, 8
        %706 = vbcast.lane.b32.xlu0 %v700, %s705
        %v707 = vpop.permute.xlu0 %706
        %v708 = vlaneseq
        %v709 = vshrl.u32 %v708, 7
        %v710 = vsub.s32 3, %v709
        %v711 = vrot.slane %v448, %v710
        %713 = vbcast.lane.b32.xlu0 %v711, 256
        %v714 = vpop.permute.xlu0 %713
        %s716 = sor.u32 256, 8
        %717 = vbcast.lane.b32.xlu0 %v711, %s716
        %v718 = vpop.permute.xlu0 %717
        %v719 = vlaneseq
        %v720 = vshrl.u32 %v719, 7
        %v721 = vsub.s32 4, %v720
        %v722 = vrot.slane %v448, %v721
        %724 = vbcast.lane.b32.xlu0 %v722, 256
        %v725 = vpop.permute.xlu0 %724
        %s727 = sor.u32 256, 8
        %728 = vbcast.lane.b32.xlu0 %v722, %s727
        %v729 = vpop.permute.xlu0 %728
        %v730 = vlaneseq
        %v731 = vshrl.u32 %v730, 7
        %v732 = vsub.s32 5, %v731
        %v733 = vrot.slane %v448, %v732
        %735 = vbcast.lane.b32.xlu0 %v733, 256
        %v736 = vpop.permute.xlu0 %735
        %s738 = sor.u32 256, 8
        %739 = vbcast.lane.b32.xlu0 %v733, %s738
        %v740 = vpop.permute.xlu0 %739
        %v741 = vlaneseq
        %v742 = vshrl.u32 %v741, 7
        %v743 = vsub.s32 6, %v742
        %v744 = vrot.slane %v448, %v743
        %746 = vbcast.lane.b32.xlu0 %v744, 256
        %v747 = vpop.permute.xlu0 %746
        %s749 = sor.u32 256, 8
        %750 = vbcast.lane.b32.xlu0 %v744, %s749
        %v751 = vpop.permute.xlu0 %750
        %v752 = vlaneseq
        %v753 = vshrl.u32 %v752, 7
        %v754 = vsub.s32 7, %v753
        %v755 = vrot.slane %v448, %v754
        %757 = vbcast.lane.b32.xlu0 %v755, 256
        %v758 = vpop.permute.xlu0 %757
        %s760 = sor.u32 256, 8
        %761 = vbcast.lane.b32.xlu0 %v755, %s760
        %v762 = vpop.permute.xlu0 %761
        %v763 = vlaneseq
        %v764 = vshrl.u32 %v763, 7
        %v765 = vsub.s32 0, %v764
        %v766 = vrot.slane %v449, %v765
        %768 = vbcast.lane.b32.xlu0 %v766, 256
        %v769 = vpop.permute.xlu0 %768
        %s771 = sor.u32 256, 8
        %772 = vbcast.lane.b32.xlu0 %v766, %s771
        %v773 = vpop.permute.xlu0 %772
        %v774 = vlaneseq
        %v775 = vshrl.u32 %v774, 7
        %v776 = vsub.s32 1, %v775
        %v777 = vrot.slane %v449, %v776
        %779 = vbcast.lane.b32.xlu0 %v777, 256
        %v780 = vpop.permute.xlu0 %779
        %s782 = sor.u32 256, 8
        %783 = vbcast.lane.b32.xlu0 %v777, %s782
        %v784 = vpop.permute.xlu0 %783
        %v785 = vlaneseq
        %v786 = vshrl.u32 %v785, 7
        %v787 = vsub.s32 2, %v786
        %v788 = vrot.slane %v449, %v787
        %790 = vbcast.lane.b32.xlu0 %v788, 256
        %v791 = vpop.permute.xlu0 %790
        %s793 = sor.u32 256, 8
        %794 = vbcast.lane.b32.xlu0 %v788, %s793
        %v795 = vpop.permute.xlu0 %794
        %v796 = vlaneseq
        %v797 = vshrl.u32 %v796, 7
        %v798 = vsub.s32 3, %v797
        %v799 = vrot.slane %v449, %v798
        %801 = vbcast.lane.b32.xlu0 %v799, 256
        %v802 = vpop.permute.xlu0 %801
        %s804 = sor.u32 256, 8
        %805 = vbcast.lane.b32.xlu0 %v799, %s804
        %v806 = vpop.permute.xlu0 %805
        %v807 = vlaneseq
        %v808 = vshrl.u32 %v807, 7
        %v809 = vsub.s32 4, %v808
        %v810 = vrot.slane %v449, %v809
        %812 = vbcast.lane.b32.xlu0 %v810, 256
        %v813 = vpop.permute.xlu0 %812
        %s815 = sor.u32 256, 8
        %816 = vbcast.lane.b32.xlu0 %v810, %s815
        %v817 = vpop.permute.xlu0 %816
        %v818 = vlaneseq
        %v819 = vshrl.u32 %v818, 7
        %v820 = vsub.s32 5, %v819
        %v821 = vrot.slane %v449, %v820
        %823 = vbcast.lane.b32.xlu0 %v821, 256
        %v824 = vpop.permute.xlu0 %823
        %s826 = sor.u32 256, 8
        %827 = vbcast.lane.b32.xlu0 %v821, %s826
        %v828 = vpop.permute.xlu0 %827
        %v829 = vlaneseq
        %v830 = vshrl.u32 %v829, 7
        %v831 = vsub.s32 6, %v830
        %v832 = vrot.slane %v449, %v831
        %834 = vbcast.lane.b32.xlu0 %v832, 256
        %v835 = vpop.permute.xlu0 %834
        %s837 = sor.u32 256, 8
        %838 = vbcast.lane.b32.xlu0 %v832, %s837
        %v839 = vpop.permute.xlu0 %838
        %v840 = vlaneseq
        %v841 = vshrl.u32 %v840, 7
        %v842 = vsub.s32 7, %v841
        %v843 = vrot.slane %v449, %v842
        %845 = vbcast.lane.b32.xlu0 %v843, 256
        %v846 = vpop.permute.xlu0 %845
        %s848 = sor.u32 256, 8
        %849 = vbcast.lane.b32.xlu0 %v843, %s848
        %v850 = vpop.permute.xlu0 %849
        %v851 = vmin.f32 %v681, %v459
        %v852 = vmin.f32 %v685, %v460
        %v853 = vmin.f32 %v692, %v459
        %v854 = vmin.f32 %v696, %v460
        %v855 = vmin.f32 %v703, %v459
        %v856 = vmin.f32 %v707, %v460
        %v857 = vmin.f32 %v714, %v459
        %v858 = vmin.f32 %v718, %v460
        %v859 = vmin.f32 %v725, %v459
        %v860 = vmin.f32 %v729, %v460
        %v861 = vmin.f32 %v736, %v459
        %v862 = vmin.f32 %v740, %v460
        %v863 = vmin.f32 %v747, %v459
        %v864 = vmin.f32 %v751, %v460
        %v865 = vmin.f32 %v758, %v459
        %v866 = vmin.f32 %v762, %v460
        %v867 = vmin.f32 %v769, %v459
        %v868 = vmin.f32 %v773, %v460
        %v869 = vmin.f32 %v780, %v459
        %v870 = vmin.f32 %v784, %v460
        %v871 = vmin.f32 %v791, %v459
        %v872 = vmin.f32 %v795, %v460
        %v873 = vmin.f32 %v802, %v459
        %v874 = vmin.f32 %v806, %v460
        %v875 = vmin.f32 %v813, %v459
        %v876 = vmin.f32 %v817, %v460
        %v877 = vmin.f32 %v824, %v459
        %v878 = vmin.f32 %v828, %v460
        %v879 = vmin.f32 %v835, %v459
        %v880 = vmin.f32 %v839, %v460
        %v881 = vmin.f32 %v846, %v459
        %v882 = vmin.f32 %v850, %v460
        %v883 = vadd.f32 %v643, %v851
        %v884 = vadd.f32 %v644, %v852
        %v885 = vadd.f32 %v645, %v853
        %v886 = vadd.f32 %v646, %v854
        %v887 = vadd.f32 %v647, %v855
        %v888 = vadd.f32 %v648, %v856
        %v889 = vadd.f32 %v649, %v857
        %v890 = vadd.f32 %v650, %v858
        %v891 = vadd.f32 %v651, %v859
        %v892 = vadd.f32 %v652, %v860
        %v893 = vadd.f32 %v653, %v861
        %v894 = vadd.f32 %v654, %v862
        %v895 = vadd.f32 %v655, %v863
        %v896 = vadd.f32 %v656, %v864
        %v897 = vadd.f32 %v657, %v865
        %v898 = vadd.f32 %v658, %v866
        %v899 = vadd.f32 %v659, %v867
        %v900 = vadd.f32 %v660, %v868
        %v901 = vadd.f32 %v661, %v869
        %v902 = vadd.f32 %v662, %v870
        %v903 = vadd.f32 %v663, %v871
        %v904 = vadd.f32 %v664, %v872
        %v905 = vadd.f32 %v665, %v873
        %v906 = vadd.f32 %v666, %v874
        %v907 = vadd.f32 %v667, %v875
        %v908 = vadd.f32 %v668, %v876
        %v909 = vadd.f32 %v669, %v877
        %v910 = vadd.f32 %v670, %v878
        %v911 = vadd.f32 %v671, %v879
        %v912 = vadd.f32 %v672, %v880
        %v913 = vadd.f32 %v673, %v881
        %v914 = vadd.f32 %v674, %v882
        %v915 = vlaneseq
        %v916 = vshrl.u32 %v915, 7
        %v917 = vsub.s32 0, %v916
        %v918 = vrot.slane %v439, %v917
        %920 = vbcast.lane.b32.xlu0 %v918, 256
        %v921 = vpop.permute.xlu0 %920
        %s923 = sor.u32 256, 8
        %924 = vbcast.lane.b32.xlu0 %v918, %s923
        %v925 = vpop.permute.xlu0 %924
        %v926 = vlaneseq
        %v927 = vshrl.u32 %v926, 7
        %v928 = vsub.s32 1, %v927
        %v929 = vrot.slane %v439, %v928
        %931 = vbcast.lane.b32.xlu0 %v929, 256
        %v932 = vpop.permute.xlu0 %931
        %s934 = sor.u32 256, 8
        %935 = vbcast.lane.b32.xlu0 %v929, %s934
        %v936 = vpop.permute.xlu0 %935
        %v937 = vlaneseq
        %v938 = vshrl.u32 %v937, 7
        %v939 = vsub.s32 2, %v938
        %v940 = vrot.slane %v439, %v939
        %942 = vbcast.lane.b32.xlu0 %v940, 256
        %v943 = vpop.permute.xlu0 %942
        %s945 = sor.u32 256, 8
        %946 = vbcast.lane.b32.xlu0 %v940, %s945
        %v947 = vpop.permute.xlu0 %946
        %v948 = vlaneseq
        %v949 = vshrl.u32 %v948, 7
        %v950 = vsub.s32 3, %v949
        %v951 = vrot.slane %v439, %v950
        %953 = vbcast.lane.b32.xlu0 %v951, 256
        %v954 = vpop.permute.xlu0 %953
        %s956 = sor.u32 256, 8
        %957 = vbcast.lane.b32.xlu0 %v951, %s956
        %v958 = vpop.permute.xlu0 %957
        %v959 = vlaneseq
        %v960 = vshrl.u32 %v959, 7
        %v961 = vsub.s32 4, %v960
        %v962 = vrot.slane %v439, %v961
        %964 = vbcast.lane.b32.xlu0 %v962, 256
        %v965 = vpop.permute.xlu0 %964
        %s967 = sor.u32 256, 8
        %968 = vbcast.lane.b32.xlu0 %v962, %s967
        %v969 = vpop.permute.xlu0 %968
        %v970 = vlaneseq
        %v971 = vshrl.u32 %v970, 7
        %v972 = vsub.s32 5, %v971
        %v973 = vrot.slane %v439, %v972
        %975 = vbcast.lane.b32.xlu0 %v973, 256
        %v976 = vpop.permute.xlu0 %975
        %s978 = sor.u32 256, 8
        %979 = vbcast.lane.b32.xlu0 %v973, %s978
        %v980 = vpop.permute.xlu0 %979
        %v981 = vlaneseq
        %v982 = vshrl.u32 %v981, 7
        %v983 = vsub.s32 6, %v982
        %v984 = vrot.slane %v439, %v983
        %986 = vbcast.lane.b32.xlu0 %v984, 256
        %v987 = vpop.permute.xlu0 %986
        %s989 = sor.u32 256, 8
        %990 = vbcast.lane.b32.xlu0 %v984, %s989
        %v991 = vpop.permute.xlu0 %990
        %v992 = vlaneseq
        %v993 = vshrl.u32 %v992, 7
        %v994 = vsub.s32 7, %v993
        %v995 = vrot.slane %v439, %v994
        %997 = vbcast.lane.b32.xlu0 %v995, 256
        %v998 = vpop.permute.xlu0 %997
        %s1000 = sor.u32 256, 8
        %1001 = vbcast.lane.b32.xlu0 %v995, %s1000
        %v1002 = vpop.permute.xlu0 %1001
        %v1003 = vlaneseq
        %v1004 = vshrl.u32 %v1003, 7
        %v1005 = vsub.s32 0, %v1004
        %v1006 = vrot.slane %v440, %v1005
        %1008 = vbcast.lane.b32.xlu0 %v1006, 256
        %v1009 = vpop.permute.xlu0 %1008
        %s1011 = sor.u32 256, 8
        %1012 = vbcast.lane.b32.xlu0 %v1006, %s1011
        %v1013 = vpop.permute.xlu0 %1012
        %v1014 = vlaneseq
        %v1015 = vshrl.u32 %v1014, 7
        %v1016 = vsub.s32 1, %v1015
        %v1017 = vrot.slane %v440, %v1016
        %1019 = vbcast.lane.b32.xlu0 %v1017, 256
        %v1020 = vpop.permute.xlu0 %1019
        %s1022 = sor.u32 256, 8
        %1023 = vbcast.lane.b32.xlu0 %v1017, %s1022
        %v1024 = vpop.permute.xlu0 %1023
        %v1025 = vlaneseq
        %v1026 = vshrl.u32 %v1025, 7
        %v1027 = vsub.s32 2, %v1026
        %v1028 = vrot.slane %v440, %v1027
        %1030 = vbcast.lane.b32.xlu0 %v1028, 256
        %v1031 = vpop.permute.xlu0 %1030
        %s1033 = sor.u32 256, 8
        %1034 = vbcast.lane.b32.xlu0 %v1028, %s1033
        %v1035 = vpop.permute.xlu0 %1034
        %v1036 = vlaneseq
        %v1037 = vshrl.u32 %v1036, 7
        %v1038 = vsub.s32 3, %v1037
        %v1039 = vrot.slane %v440, %v1038
        %1041 = vbcast.lane.b32.xlu0 %v1039, 256
        %v1042 = vpop.permute.xlu0 %1041
        %s1044 = sor.u32 256, 8
        %1045 = vbcast.lane.b32.xlu0 %v1039, %s1044
        %v1046 = vpop.permute.xlu0 %1045
        %v1047 = vlaneseq
        %v1048 = vshrl.u32 %v1047, 7
        %v1049 = vsub.s32 4, %v1048
        %v1050 = vrot.slane %v440, %v1049
        %1052 = vbcast.lane.b32.xlu0 %v1050, 256
        %v1053 = vpop.permute.xlu0 %1052
        %s1055 = sor.u32 256, 8
        %1056 = vbcast.lane.b32.xlu0 %v1050, %s1055
        %v1057 = vpop.permute.xlu0 %1056
        %v1058 = vlaneseq
        %v1059 = vshrl.u32 %v1058, 7
        %v1060 = vsub.s32 5, %v1059
        %v1061 = vrot.slane %v440, %v1060
        %1063 = vbcast.lane.b32.xlu0 %v1061, 256
        %v1064 = vpop.permute.xlu0 %1063
        %s1066 = sor.u32 256, 8
        %1067 = vbcast.lane.b32.xlu0 %v1061, %s1066
        %v1068 = vpop.permute.xlu0 %1067
        %v1069 = vlaneseq
        %v1070 = vshrl.u32 %v1069, 7
        %v1071 = vsub.s32 6, %v1070
        %v1072 = vrot.slane %v440, %v1071
        %1074 = vbcast.lane.b32.xlu0 %v1072, 256
        %v1075 = vpop.permute.xlu0 %1074
        %s1077 = sor.u32 256, 8
        %1078 = vbcast.lane.b32.xlu0 %v1072, %s1077
        %v1079 = vpop.permute.xlu0 %1078
        %v1080 = vlaneseq
        %v1081 = vshrl.u32 %v1080, 7
        %v1082 = vsub.s32 7, %v1081
        %v1083 = vrot.slane %v440, %v1082
        %1085 = vbcast.lane.b32.xlu0 %v1083, 256
        %v1086 = vpop.permute.xlu0 %1085
        %s1088 = sor.u32 256, 8
        %1089 = vbcast.lane.b32.xlu0 %v1083, %s1088
        %v1090 = vpop.permute.xlu0 %1089
        %v1091 = vmin.f32 %v921, %v450
        %v1092 = vmin.f32 %v925, %v451
        %v1093 = vmin.f32 %v932, %v450
        %v1094 = vmin.f32 %v936, %v451
        %v1095 = vmin.f32 %v943, %v450
        %v1096 = vmin.f32 %v947, %v451
        %v1097 = vmin.f32 %v954, %v450
        %v1098 = vmin.f32 %v958, %v451
        %v1099 = vmin.f32 %v965, %v450
        %v1100 = vmin.f32 %v969, %v451
        %v1101 = vmin.f32 %v976, %v450
        %v1102 = vmin.f32 %v980, %v451
        %v1103 = vmin.f32 %v987, %v450
        %v1104 = vmin.f32 %v991, %v451
        %v1105 = vmin.f32 %v998, %v450
        %v1106 = vmin.f32 %v1002, %v451
        %v1107 = vmin.f32 %v1009, %v450
        %v1108 = vmin.f32 %v1013, %v451
        %v1109 = vmin.f32 %v1020, %v450
        %v1110 = vmin.f32 %v1024, %v451
        %v1111 = vmin.f32 %v1031, %v450
        %v1112 = vmin.f32 %v1035, %v451
        %v1113 = vmin.f32 %v1042, %v450
        %v1114 = vmin.f32 %v1046, %v451
        %v1115 = vmin.f32 %v1053, %v450
        %v1116 = vmin.f32 %v1057, %v451
        %v1117 = vmin.f32 %v1064, %v450
        %v1118 = vmin.f32 %v1068, %v451
        %v1119 = vmin.f32 %v1075, %v450
        %v1120 = vmin.f32 %v1079, %v451
        %v1121 = vmin.f32 %v1086, %v450
        %v1122 = vmin.f32 %v1090, %v451
        %v1123 = vlaneseq
        %v1124 = vshrl.u32 %v1123, 7
        %v1125 = vsub.s32 0, %v1124
        %v1126 = vrot.slane %v445, %v1125
        %1128 = vbcast.lane.b32.xlu0 %v1126, 256
        %v1129 = vpop.permute.xlu0 %1128
        %s1131 = sor.u32 256, 8
        %1132 = vbcast.lane.b32.xlu0 %v1126, %s1131
        %v1133 = vpop.permute.xlu0 %1132
        %v1134 = vlaneseq
        %v1135 = vshrl.u32 %v1134, 7
        %v1136 = vsub.s32 1, %v1135
        %v1137 = vrot.slane %v445, %v1136
        %1139 = vbcast.lane.b32.xlu0 %v1137, 256
        %v1140 = vpop.permute.xlu0 %1139
        %s1142 = sor.u32 256, 8
        %1143 = vbcast.lane.b32.xlu0 %v1137, %s1142
        %v1144 = vpop.permute.xlu0 %1143
        %v1145 = vlaneseq
        %v1146 = vshrl.u32 %v1145, 7
        %v1147 = vsub.s32 2, %v1146
        %v1148 = vrot.slane %v445, %v1147
        %1150 = vbcast.lane.b32.xlu0 %v1148, 256
        %v1151 = vpop.permute.xlu0 %1150
        %s1153 = sor.u32 256, 8
        %1154 = vbcast.lane.b32.xlu0 %v1148, %s1153
        %v1155 = vpop.permute.xlu0 %1154
        %v1156 = vlaneseq
        %v1157 = vshrl.u32 %v1156, 7
        %v1158 = vsub.s32 3, %v1157
        %v1159 = vrot.slane %v445, %v1158
        %1161 = vbcast.lane.b32.xlu0 %v1159, 256
        %v1162 = vpop.permute.xlu0 %1161
        %s1164 = sor.u32 256, 8
        %1165 = vbcast.lane.b32.xlu0 %v1159, %s1164
        %v1166 = vpop.permute.xlu0 %1165
        %v1167 = vlaneseq
        %v1168 = vshrl.u32 %v1167, 7
        %v1169 = vsub.s32 4, %v1168
        %v1170 = vrot.slane %v445, %v1169
        %1172 = vbcast.lane.b32.xlu0 %v1170, 256
        %v1173 = vpop.permute.xlu0 %1172
        %s1175 = sor.u32 256, 8
        %1176 = vbcast.lane.b32.xlu0 %v1170, %s1175
        %v1177 = vpop.permute.xlu0 %1176
        %v1178 = vlaneseq
        %v1179 = vshrl.u32 %v1178, 7
        %v1180 = vsub.s32 5, %v1179
        %v1181 = vrot.slane %v445, %v1180
        %1183 = vbcast.lane.b32.xlu0 %v1181, 256
        %v1184 = vpop.permute.xlu0 %1183
        %s1186 = sor.u32 256, 8
        %1187 = vbcast.lane.b32.xlu0 %v1181, %s1186
        %v1188 = vpop.permute.xlu0 %1187
        %v1189 = vlaneseq
        %v1190 = vshrl.u32 %v1189, 7
        %v1191 = vsub.s32 6, %v1190
        %v1192 = vrot.slane %v445, %v1191
        %1194 = vbcast.lane.b32.xlu0 %v1192, 256
        %v1195 = vpop.permute.xlu0 %1194
        %s1197 = sor.u32 256, 8
        %1198 = vbcast.lane.b32.xlu0 %v1192, %s1197
        %v1199 = vpop.permute.xlu0 %1198
        %v1200 = vlaneseq
        %v1201 = vshrl.u32 %v1200, 7
        %v1202 = vsub.s32 7, %v1201
        %v1203 = vrot.slane %v445, %v1202
        %1205 = vbcast.lane.b32.xlu0 %v1203, 256
        %v1206 = vpop.permute.xlu0 %1205
        %s1208 = sor.u32 256, 8
        %1209 = vbcast.lane.b32.xlu0 %v1203, %s1208
        %v1210 = vpop.permute.xlu0 %1209
        %v1211 = vlaneseq
        %v1212 = vshrl.u32 %v1211, 7
        %v1213 = vsub.s32 0, %v1212
        %v1214 = vrot.slane %v446, %v1213
        %1216 = vbcast.lane.b32.xlu0 %v1214, 256
        %v1217 = vpop.permute.xlu0 %1216
        %s1219 = sor.u32 256, 8
        %1220 = vbcast.lane.b32.xlu0 %v1214, %s1219
        %v1221 = vpop.permute.xlu0 %1220
        %v1222 = vlaneseq
        %v1223 = vshrl.u32 %v1222, 7
        %v1224 = vsub.s32 1, %v1223
        %v1225 = vrot.slane %v446, %v1224
        %1227 = vbcast.lane.b32.xlu0 %v1225, 256
        %v1228 = vpop.permute.xlu0 %1227
        %s1230 = sor.u32 256, 8
        %1231 = vbcast.lane.b32.xlu0 %v1225, %s1230
        %v1232 = vpop.permute.xlu0 %1231
        %v1233 = vlaneseq
        %v1234 = vshrl.u32 %v1233, 7
        %v1235 = vsub.s32 2, %v1234
        %v1236 = vrot.slane %v446, %v1235
        %1238 = vbcast.lane.b32.xlu0 %v1236, 256
        %v1239 = vpop.permute.xlu0 %1238
        %s1241 = sor.u32 256, 8
        %1242 = vbcast.lane.b32.xlu0 %v1236, %s1241
        %v1243 = vpop.permute.xlu0 %1242
        %v1244 = vlaneseq
        %v1245 = vshrl.u32 %v1244, 7
        %v1246 = vsub.s32 3, %v1245
        %v1247 = vrot.slane %v446, %v1246
        %1249 = vbcast.lane.b32.xlu0 %v1247, 256
        %v1250 = vpop.permute.xlu0 %1249
        %s1252 = sor.u32 256, 8
        %1253 = vbcast.lane.b32.xlu0 %v1247, %s1252
        %v1254 = vpop.permute.xlu0 %1253
        %v1255 = vlaneseq
        %v1256 = vshrl.u32 %v1255, 7
        %v1257 = vsub.s32 4, %v1256
        %v1258 = vrot.slane %v446, %v1257
        %1260 = vbcast.lane.b32.xlu0 %v1258, 256
        %v1261 = vpop.permute.xlu0 %1260
        %s1263 = sor.u32 256, 8
        %1264 = vbcast.lane.b32.xlu0 %v1258, %s1263
        %v1265 = vpop.permute.xlu0 %1264
        %v1266 = vlaneseq
        %v1267 = vshrl.u32 %v1266, 7
        %v1268 = vsub.s32 5, %v1267
        %v1269 = vrot.slane %v446, %v1268
        %1271 = vbcast.lane.b32.xlu0 %v1269, 256
        %v1272 = vpop.permute.xlu0 %1271
        %s1274 = sor.u32 256, 8
        %1275 = vbcast.lane.b32.xlu0 %v1269, %s1274
        %v1276 = vpop.permute.xlu0 %1275
        %v1277 = vlaneseq
        %v1278 = vshrl.u32 %v1277, 7
        %v1279 = vsub.s32 6, %v1278
        %v1280 = vrot.slane %v446, %v1279
        %1282 = vbcast.lane.b32.xlu0 %v1280, 256
        %v1283 = vpop.permute.xlu0 %1282
        %s1285 = sor.u32 256, 8
        %1286 = vbcast.lane.b32.xlu0 %v1280, %s1285
        %v1287 = vpop.permute.xlu0 %1286
        %v1288 = vlaneseq
        %v1289 = vshrl.u32 %v1288, 7
        %v1290 = vsub.s32 7, %v1289
        %v1291 = vrot.slane %v446, %v1290
        %1293 = vbcast.lane.b32.xlu0 %v1291, 256
        %v1294 = vpop.permute.xlu0 %1293
        %s1296 = sor.u32 256, 8
        %1297 = vbcast.lane.b32.xlu0 %v1291, %s1296
        %v1298 = vpop.permute.xlu0 %1297
        %v1299 = vmin.f32 %v1129, %v456
        %v1300 = vmin.f32 %v1133, %v457
        %v1301 = vmin.f32 %v1140, %v456
        %v1302 = vmin.f32 %v1144, %v457
        %v1303 = vmin.f32 %v1151, %v456
        %v1304 = vmin.f32 %v1155, %v457
        %v1305 = vmin.f32 %v1162, %v456
        %v1306 = vmin.f32 %v1166, %v457
        %v1307 = vmin.f32 %v1173, %v456
        %v1308 = vmin.f32 %v1177, %v457
        %v1309 = vmin.f32 %v1184, %v456
        %v1310 = vmin.f32 %v1188, %v457
        %v1311 = vmin.f32 %v1195, %v456
        %v1312 = vmin.f32 %v1199, %v457
        %v1313 = vmin.f32 %v1206, %v456
        %v1314 = vmin.f32 %v1210, %v457
        %v1315 = vmin.f32 %v1217, %v456
        %v1316 = vmin.f32 %v1221, %v457
        %v1317 = vmin.f32 %v1228, %v456
        %v1318 = vmin.f32 %v1232, %v457
        %v1319 = vmin.f32 %v1239, %v456
        %v1320 = vmin.f32 %v1243, %v457
        %v1321 = vmin.f32 %v1250, %v456
        %v1322 = vmin.f32 %v1254, %v457
        %v1323 = vmin.f32 %v1261, %v456
        %v1324 = vmin.f32 %v1265, %v457
        %v1325 = vmin.f32 %v1272, %v456
        %v1326 = vmin.f32 %v1276, %v457
        %v1327 = vmin.f32 %v1283, %v456
        %v1328 = vmin.f32 %v1287, %v457
        %v1329 = vmin.f32 %v1294, %v456
        %v1330 = vmin.f32 %v1298, %v457
        %v1331 = vadd.f32 %v1091, %v1299
        %v1332 = vadd.f32 %v1092, %v1300
        %v1333 = vadd.f32 %v1093, %v1301
        %v1334 = vadd.f32 %v1094, %v1302
        %v1335 = vadd.f32 %v1095, %v1303
        %v1336 = vadd.f32 %v1096, %v1304
        %v1337 = vadd.f32 %v1097, %v1305
        %v1338 = vadd.f32 %v1098, %v1306
        %v1339 = vadd.f32 %v1099, %v1307
        %v1340 = vadd.f32 %v1100, %v1308
        %v1341 = vadd.f32 %v1101, %v1309
        %v1342 = vadd.f32 %v1102, %v1310
        %v1343 = vadd.f32 %v1103, %v1311
        %v1344 = vadd.f32 %v1104, %v1312
        %v1345 = vadd.f32 %v1105, %v1313
        %v1346 = vadd.f32 %v1106, %v1314
        %v1347 = vadd.f32 %v1107, %v1315
        %v1348 = vadd.f32 %v1108, %v1316
        %v1349 = vadd.f32 %v1109, %v1317
        %v1350 = vadd.f32 %v1110, %v1318
        %v1351 = vadd.f32 %v1111, %v1319
        %v1352 = vadd.f32 %v1112, %v1320
        %v1353 = vadd.f32 %v1113, %v1321
        %v1354 = vadd.f32 %v1114, %v1322
        %v1355 = vadd.f32 %v1115, %v1323
        %v1356 = vadd.f32 %v1116, %v1324
        %v1357 = vadd.f32 %v1117, %v1325
        %v1358 = vadd.f32 %v1118, %v1326
        %v1359 = vadd.f32 %v1119, %v1327
        %v1360 = vadd.f32 %v1120, %v1328
        %v1361 = vadd.f32 %v1121, %v1329
        %v1362 = vadd.f32 %v1122, %v1330
        %v1363 = vmul.f32 %v883, %v1331
        %v1364 = vmul.f32 %v884, %v1332
        %v1365 = vmul.f32 %v885, %v1333
        %v1366 = vmul.f32 %v886, %v1334
        %v1367 = vmul.f32 %v887, %v1335
        %v1368 = vmul.f32 %v888, %v1336
        %v1369 = vmul.f32 %v889, %v1337
        %v1370 = vmul.f32 %v890, %v1338
        %v1371 = vmul.f32 %v891, %v1339
        %v1372 = vmul.f32 %v892, %v1340
        %v1373 = vmul.f32 %v893, %v1341
        %v1374 = vmul.f32 %v894, %v1342
        %v1375 = vmul.f32 %v895, %v1343
        %v1376 = vmul.f32 %v896, %v1344
        %v1377 = vmul.f32 %v897, %v1345
        %v1378 = vmul.f32 %v898, %v1346
        %v1379 = vmul.f32 %v899, %v1347
        %v1380 = vmul.f32 %v900, %v1348
        %v1381 = vmul.f32 %v901, %v1349
        %v1382 = vmul.f32 %v902, %v1350
        %v1383 = vmul.f32 %v903, %v1351
        %v1384 = vmul.f32 %v904, %v1352
        %v1385 = vmul.f32 %v905, %v1353
        %v1386 = vmul.f32 %v906, %v1354
        %v1387 = vmul.f32 %v907, %v1355
        %v1388 = vmul.f32 %v908, %v1356
        %v1389 = vmul.f32 %v909, %v1357
        %v1390 = vmul.f32 %v910, %v1358
        %v1391 = vmul.f32 %v911, %v1359
        %v1392 = vmul.f32 %v912, %v1360
        %v1393 = vmul.f32 %v913, %v1361
        %v1394 = vmul.f32 %v914, %v1362
        %v1395 = vlaneseq
        %v1396 = vshrl.u32 %v1395, 7
        %v1397 = vsub.s32 0, %v1396
        %v1398 = vrot.slane %v465, %v1397
        %1400 = vbcast.lane.b32.xlu0 %v1398, 256
        %v1401 = vpop.permute.xlu0 %1400
        %s1403 = sor.u32 256, 8
        %1404 = vbcast.lane.b32.xlu0 %v1398, %s1403
        %v1405 = vpop.permute.xlu0 %1404
        %v1406 = vlaneseq
        %v1407 = vshrl.u32 %v1406, 7
        %v1408 = vsub.s32 1, %v1407
        %v1409 = vrot.slane %v465, %v1408
        %1411 = vbcast.lane.b32.xlu0 %v1409, 256
        %v1412 = vpop.permute.xlu0 %1411
        %s1414 = sor.u32 256, 8
        %1415 = vbcast.lane.b32.xlu0 %v1409, %s1414
        %v1416 = vpop.permute.xlu0 %1415
        %v1417 = vlaneseq
        %v1418 = vshrl.u32 %v1417, 7
        %v1419 = vsub.s32 2, %v1418
        %v1420 = vrot.slane %v465, %v1419
        %1422 = vbcast.lane.b32.xlu0 %v1420, 256
        %v1423 = vpop.permute.xlu0 %1422
        %s1425 = sor.u32 256, 8
        %1426 = vbcast.lane.b32.xlu0 %v1420, %s1425
        %v1427 = vpop.permute.xlu0 %1426
        %v1428 = vlaneseq
        %v1429 = vshrl.u32 %v1428, 7
        %v1430 = vsub.s32 3, %v1429
        %v1431 = vrot.slane %v465, %v1430
        %1433 = vbcast.lane.b32.xlu0 %v1431, 256
        %v1434 = vpop.permute.xlu0 %1433
        %s1436 = sor.u32 256, 8
        %1437 = vbcast.lane.b32.xlu0 %v1431, %s1436
        %v1438 = vpop.permute.xlu0 %1437
        %v1439 = vlaneseq
        %v1440 = vshrl.u32 %v1439, 7
        %v1441 = vsub.s32 4, %v1440
        %v1442 = vrot.slane %v465, %v1441
        %1444 = vbcast.lane.b32.xlu0 %v1442, 256
        %v1445 = vpop.permute.xlu0 %1444
        %s1447 = sor.u32 256, 8
        %1448 = vbcast.lane.b32.xlu0 %v1442, %s1447
        %v1449 = vpop.permute.xlu0 %1448
        %v1450 = vlaneseq
        %v1451 = vshrl.u32 %v1450, 7
        %v1452 = vsub.s32 5, %v1451
        %v1453 = vrot.slane %v465, %v1452
        %1455 = vbcast.lane.b32.xlu0 %v1453, 256
        %v1456 = vpop.permute.xlu0 %1455
        %s1458 = sor.u32 256, 8
        %1459 = vbcast.lane.b32.xlu0 %v1453, %s1458
        %v1460 = vpop.permute.xlu0 %1459
        %v1461 = vlaneseq
        %v1462 = vshrl.u32 %v1461, 7
        %v1463 = vsub.s32 6, %v1462
        %v1464 = vrot.slane %v465, %v1463
        %1466 = vbcast.lane.b32.xlu0 %v1464, 256
        %v1467 = vpop.permute.xlu0 %1466
        %s1469 = sor.u32 256, 8
        %1470 = vbcast.lane.b32.xlu0 %v1464, %s1469
        %v1471 = vpop.permute.xlu0 %1470
        %v1472 = vlaneseq
        %v1473 = vshrl.u32 %v1472, 7
        %v1474 = vsub.s32 7, %v1473
        %v1475 = vrot.slane %v465, %v1474
        %1477 = vbcast.lane.b32.xlu0 %v1475, 256
        %v1478 = vpop.permute.xlu0 %1477
        %s1480 = sor.u32 256, 8
        %1481 = vbcast.lane.b32.xlu0 %v1475, %s1480
        %v1482 = vpop.permute.xlu0 %1481
        %v1483 = vlaneseq
        %v1484 = vshrl.u32 %v1483, 7
        %v1485 = vsub.s32 0, %v1484
        %v1486 = vrot.slane %v466, %v1485
        %1488 = vbcast.lane.b32.xlu0 %v1486, 256
        %v1489 = vpop.permute.xlu0 %1488
        %s1491 = sor.u32 256, 8
        %1492 = vbcast.lane.b32.xlu0 %v1486, %s1491
        %v1493 = vpop.permute.xlu0 %1492
        %v1494 = vlaneseq
        %v1495 = vshrl.u32 %v1494, 7
        %v1496 = vsub.s32 1, %v1495
        %v1497 = vrot.slane %v466, %v1496
        %1499 = vbcast.lane.b32.xlu0 %v1497, 256
        %v1500 = vpop.permute.xlu0 %1499
        %s1502 = sor.u32 256, 8
        %1503 = vbcast.lane.b32.xlu0 %v1497, %s1502
        %v1504 = vpop.permute.xlu0 %1503
        %v1505 = vlaneseq
        %v1506 = vshrl.u32 %v1505, 7
        %v1507 = vsub.s32 2, %v1506
        %v1508 = vrot.slane %v466, %v1507
        %1510 = vbcast.lane.b32.xlu0 %v1508, 256
        %v1511 = vpop.permute.xlu0 %1510
        %s1513 = sor.u32 256, 8
        %1514 = vbcast.lane.b32.xlu0 %v1508, %s1513
        %v1515 = vpop.permute.xlu0 %1514
        %v1516 = vlaneseq
        %v1517 = vshrl.u32 %v1516, 7
        %v1518 = vsub.s32 3, %v1517
        %v1519 = vrot.slane %v466, %v1518
        %1521 = vbcast.lane.b32.xlu0 %v1519, 256
        %v1522 = vpop.permute.xlu0 %1521
        %s1524 = sor.u32 256, 8
        %1525 = vbcast.lane.b32.xlu0 %v1519, %s1524
        %v1526 = vpop.permute.xlu0 %1525
        %v1527 = vlaneseq
        %v1528 = vshrl.u32 %v1527, 7
        %v1529 = vsub.s32 4, %v1528
        %v1530 = vrot.slane %v466, %v1529
        %1532 = vbcast.lane.b32.xlu0 %v1530, 256
        %v1533 = vpop.permute.xlu0 %1532
        %s1535 = sor.u32 256, 8
        %1536 = vbcast.lane.b32.xlu0 %v1530, %s1535
        %v1537 = vpop.permute.xlu0 %1536
        %v1538 = vlaneseq
        %v1539 = vshrl.u32 %v1538, 7
        %v1540 = vsub.s32 5, %v1539
        %v1541 = vrot.slane %v466, %v1540
        %1543 = vbcast.lane.b32.xlu0 %v1541, 256
        %v1544 = vpop.permute.xlu0 %1543
        %s1546 = sor.u32 256, 8
        %1547 = vbcast.lane.b32.xlu0 %v1541, %s1546
        %v1548 = vpop.permute.xlu0 %1547
        %v1549 = vlaneseq
        %v1550 = vshrl.u32 %v1549, 7
        %v1551 = vsub.s32 6, %v1550
        %v1552 = vrot.slane %v466, %v1551
        %1554 = vbcast.lane.b32.xlu0 %v1552, 256
        %v1555 = vpop.permute.xlu0 %1554
        %s1557 = sor.u32 256, 8
        %1558 = vbcast.lane.b32.xlu0 %v1552, %s1557
        %v1559 = vpop.permute.xlu0 %1558
        %v1560 = vlaneseq
        %v1561 = vshrl.u32 %v1560, 7
        %v1562 = vsub.s32 7, %v1561
        %v1563 = vrot.slane %v466, %v1562
        %1565 = vbcast.lane.b32.xlu0 %v1563, 256
        %v1566 = vpop.permute.xlu0 %1565
        %s1568 = sor.u32 256, 8
        %1569 = vbcast.lane.b32.xlu0 %v1563, %s1568
        %v1570 = vpop.permute.xlu0 %1569
        %v1571 = vld [vmem:[#allocation3] sm:$0xff]
        %v1572 = vld [vmem:[#allocation3 + $0x8] sm:$0xff]
        %v1573 = vadd.f32 %v1401, %v1571
        %v1574 = vadd.f32 %v1405, %v1572
        %v1575 = vadd.f32 %v1412, %v1571
        %v1576 = vadd.f32 %v1416, %v1572
        %v1577 = vadd.f32 %v1423, %v1571
        %v1578 = vadd.f32 %v1427, %v1572
        %v1579 = vadd.f32 %v1434, %v1571
        %v1580 = vadd.f32 %v1438, %v1572
        %v1581 = vadd.f32 %v1445, %v1571
        %v1582 = vadd.f32 %v1449, %v1572
        %v1583 = vadd.f32 %v1456, %v1571
        %v1584 = vadd.f32 %v1460, %v1572
        %v1585 = vadd.f32 %v1467, %v1571
        %v1586 = vadd.f32 %v1471, %v1572
        %v1587 = vadd.f32 %v1478, %v1571
        %v1588 = vadd.f32 %v1482, %v1572
        %v1589 = vadd.f32 %v1489, %v1571
        %v1590 = vadd.f32 %v1493, %v1572
        %v1591 = vadd.f32 %v1500, %v1571
        %v1592 = vadd.f32 %v1504, %v1572
        %v1593 = vadd.f32 %v1511, %v1571
        %v1594 = vadd.f32 %v1515, %v1572
        %v1595 = vadd.f32 %v1522, %v1571
        %v1596 = vadd.f32 %v1526, %v1572
        %v1597 = vadd.f32 %v1533, %v1571
        %v1598 = vadd.f32 %v1537, %v1572
        %v1599 = vadd.f32 %v1544, %v1571
        %v1600 = vadd.f32 %v1548, %v1572
        %v1601 = vadd.f32 %v1555, %v1571
        %v1602 = vadd.f32 %v1559, %v1572
        %v1603 = vadd.f32 %v1566, %v1571
        %v1604 = vadd.f32 %v1570, %v1572
        %v1605 = vsub.f32 %v1573, %v1363
        %v1606 = vsub.f32 %v1574, %v1364
        %v1607 = vsub.f32 %v1575, %v1365
        %v1608 = vsub.f32 %v1576, %v1366
        %v1609 = vsub.f32 %v1577, %v1367
        %v1610 = vsub.f32 %v1578, %v1368
        %v1611 = vsub.f32 %v1579, %v1369
        %v1612 = vsub.f32 %v1580, %v1370
        %v1613 = vsub.f32 %v1581, %v1371
        %v1614 = vsub.f32 %v1582, %v1372
        %v1615 = vsub.f32 %v1583, %v1373
        %v1616 = vsub.f32 %v1584, %v1374
        %v1617 = vsub.f32 %v1585, %v1375
        %v1618 = vsub.f32 %v1586, %v1376
        %v1619 = vsub.f32 %v1587, %v1377
        %v1620 = vsub.f32 %v1588, %v1378
        %v1621 = vsub.f32 %v1589, %v1379
        %v1622 = vsub.f32 %v1590, %v1380
        %v1623 = vsub.f32 %v1591, %v1381
        %v1624 = vsub.f32 %v1592, %v1382
        %v1625 = vsub.f32 %v1593, %v1383
        %v1626 = vsub.f32 %v1594, %v1384
        %v1627 = vsub.f32 %v1595, %v1385
        %v1628 = vsub.f32 %v1596, %v1386
        %v1629 = vsub.f32 %v1597, %v1387
        %v1630 = vsub.f32 %v1598, %v1388
        %v1631 = vsub.f32 %v1599, %v1389
        %v1632 = vsub.f32 %v1600, %v1390
        %v1633 = vsub.f32 %v1601, %v1391
        %v1634 = vsub.f32 %v1602, %v1392
        %v1635 = vsub.f32 %v1603, %v1393
        %v1636 = vsub.f32 %v1604, %v1394
        %v1637 = vadd.f32 %v1605, 1.0
        %v1638 = vadd.f32 %v1606, 1.0
        %v1639 = vadd.f32 %v1607, 1.0
        %v1640 = vadd.f32 %v1608, 1.0
        %v1641 = vadd.f32 %v1609, 1.0
        %v1642 = vadd.f32 %v1610, 1.0
        %v1643 = vadd.f32 %v1611, 1.0
        %v1644 = vadd.f32 %v1612, 1.0
        %v1645 = vadd.f32 %v1613, 1.0
        %v1646 = vadd.f32 %v1614, 1.0
        %v1647 = vadd.f32 %v1615, 1.0
        %v1648 = vadd.f32 %v1616, 1.0
        %v1649 = vadd.f32 %v1617, 1.0
        %v1650 = vadd.f32 %v1618, 1.0
        %v1651 = vadd.f32 %v1619, 1.0
        %v1652 = vadd.f32 %v1620, 1.0
        %v1653 = vadd.f32 %v1621, 1.0
        %v1654 = vadd.f32 %v1622, 1.0
        %v1655 = vadd.f32 %v1623, 1.0
        %v1656 = vadd.f32 %v1624, 1.0
        %v1657 = vadd.f32 %v1625, 1.0
        %v1658 = vadd.f32 %v1626, 1.0
        %v1659 = vadd.f32 %v1627, 1.0
        %v1660 = vadd.f32 %v1628, 1.0
        %v1661 = vadd.f32 %v1629, 1.0
        %v1662 = vadd.f32 %v1630, 1.0
        %v1663 = vadd.f32 %v1631, 1.0
        %v1664 = vadd.f32 %v1632, 1.0
        %v1665 = vadd.f32 %v1633, 1.0
        %v1666 = vadd.f32 %v1634, 1.0
        %v1667 = vadd.f32 %v1635, 1.0
        %v1668 = vadd.f32 %v1636, 1.0
        %v1669 = vlog2.pop %v1637
        %v1670 = vmul.f32 %v1669, 0.6931472
        %v1671 = vlog2.pop %v1638
        %v1672 = vmul.f32 %v1671, 0.6931472
        %v1673 = vlog2.pop %v1639
        %v1674 = vmul.f32 %v1673, 0.6931472
        %v1675 = vlog2.pop %v1640
        %v1676 = vmul.f32 %v1675, 0.6931472
        %v1677 = vlog2.pop %v1641
        %v1678 = vmul.f32 %v1677, 0.6931472
        %v1679 = vlog2.pop %v1642
        %v1680 = vmul.f32 %v1679, 0.6931472
        %v1681 = vlog2.pop %v1643
        %v1682 = vmul.f32 %v1681, 0.6931472
        %v1683 = vlog2.pop %v1644
        %v1684 = vmul.f32 %v1683, 0.6931472
        %v1685 = vlog2.pop %v1645
        %v1686 = vmul.f32 %v1685, 0.6931472
        %v1687 = vlog2.pop %v1646
        %v1688 = vmul.f32 %v1687, 0.6931472
        %v1689 = vlog2.pop %v1647
        %v1690 = vmul.f32 %v1689, 0.6931472
        %v1691 = vlog2.pop %v1648
        %v1692 = vmul.f32 %v1691, 0.6931472
        %v1693 = vlog2.pop %v1649
        %v1694 = vmul.f32 %v1693, 0.6931472
        %v1695 = vlog2.pop %v1650
        %v1696 = vmul.f32 %v1695, 0.6931472
        %v1697 = vlog2.pop %v1651
        %v1698 = vmul.f32 %v1697, 0.6931472
        %v1699 = vlog2.pop %v1652
        %v1700 = vmul.f32 %v1699, 0.6931472
        %v1701 = vlog2.pop %v1653
        %v1702 = vmul.f32 %v1701, 0.6931472
        %v1703 = vlog2.pop %v1654
        %v1704 = vmul.f32 %v1703, 0.6931472
        %v1705 = vlog2.pop %v1655
        %v1706 = vmul.f32 %v1705, 0.6931472
        %v1707 = vlog2.pop %v1656
        %v1708 = vmul.f32 %v1707, 0.6931472
        %v1709 = vlog2.pop %v1657
        %v1710 = vmul.f32 %v1709, 0.6931472
        %v1711 = vlog2.pop %v1658
        %v1712 = vmul.f32 %v1711, 0.6931472
        %v1713 = vlog2.pop %v1659
        %v1714 = vmul.f32 %v1713, 0.6931472
        %v1715 = vlog2.pop %v1660
        %v1716 = vmul.f32 %v1715, 0.6931472
        %v1717 = vlog2.pop %v1661
        %v1718 = vmul.f32 %v1717, 0.6931472
        %v1719 = vlog2.pop %v1662
        %v1720 = vmul.f32 %v1719, 0.6931472
        %v1721 = vlog2.pop %v1663
        %v1722 = vmul.f32 %v1721, 0.6931472
        %v1723 = vlog2.pop %v1664
        %v1724 = vmul.f32 %v1723, 0.6931472
        %v1725 = vlog2.pop %v1665
        %v1726 = vmul.f32 %v1725, 0.6931472
        %v1727 = vlog2.pop %v1666
        %v1728 = vmul.f32 %v1727, 0.6931472
        %v1729 = vlog2.pop %v1667
        %v1730 = vmul.f32 %v1729, 0.6931472
        %v1731 = vlog2.pop %v1668
        %v1732 = vmul.f32 %v1731, 0.6931472
        %v1733 = vadd.f32 %v1363, 1.0
        %v1734 = vadd.f32 %v1364, 1.0
        %v1735 = vadd.f32 %v1365, 1.0
        %v1736 = vadd.f32 %v1366, 1.0
        %v1737 = vadd.f32 %v1367, 1.0
        %v1738 = vadd.f32 %v1368, 1.0
        %v1739 = vadd.f32 %v1369, 1.0
        %v1740 = vadd.f32 %v1370, 1.0
        %v1741 = vadd.f32 %v1371, 1.0
        %v1742 = vadd.f32 %v1372, 1.0
        %v1743 = vadd.f32 %v1373, 1.0
        %v1744 = vadd.f32 %v1374, 1.0
        %v1745 = vadd.f32 %v1375, 1.0
        %v1746 = vadd.f32 %v1376, 1.0
        %v1747 = vadd.f32 %v1377, 1.0
        %v1748 = vadd.f32 %v1378, 1.0
        %v1749 = vadd.f32 %v1379, 1.0
        %v1750 = vadd.f32 %v1380, 1.0
        %v1751 = vadd.f32 %v1381, 1.0
        %v1752 = vadd.f32 %v1382, 1.0
        %v1753 = vadd.f32 %v1383, 1.0
        %v1754 = vadd.f32 %v1384, 1.0
        %v1755 = vadd.f32 %v1385, 1.0
        %v1756 = vadd.f32 %v1386, 1.0
        %v1757 = vadd.f32 %v1387, 1.0
        %v1758 = vadd.f32 %v1388, 1.0
        %v1759 = vadd.f32 %v1389, 1.0
        %v1760 = vadd.f32 %v1390, 1.0
        %v1761 = vadd.f32 %v1391, 1.0
        %v1762 = vadd.f32 %v1392, 1.0
        %v1763 = vadd.f32 %v1393, 1.0
        %v1764 = vadd.f32 %v1394, 1.0
        %v1765 = vlog2.pop %v1733
        %v1766 = vmul.f32 %v1765, 0.6931472
        %v1767 = vlog2.pop %v1734
        %v1768 = vmul.f32 %v1767, 0.6931472
        %v1769 = vlog2.pop %v1735
        %v1770 = vmul.f32 %v1769, 0.6931472
        %v1771 = vlog2.pop %v1736
        %v1772 = vmul.f32 %v1771, 0.6931472
        %v1773 = vlog2.pop %v1737
        %v1774 = vmul.f32 %v1773, 0.6931472
        %v1775 = vlog2.pop %v1738
        %v1776 = vmul.f32 %v1775, 0.6931472
        %v1777 = vlog2.pop %v1739
        %v1778 = vmul.f32 %v1777, 0.6931472
        %v1779 = vlog2.pop %v1740
        %v1780 = vmul.f32 %v1779, 0.6931472
        %v1781 = vlog2.pop %v1741
        %v1782 = vmul.f32 %v1781, 0.6931472
        %v1783 = vlog2.pop %v1742
        %v1784 = vmul.f32 %v1783, 0.6931472
        %v1785 = vlog2.pop %v1743
        %v1786 = vmul.f32 %v1785, 0.6931472
        %v1787 = vlog2.pop %v1744
        %v1788 = vmul.f32 %v1787, 0.6931472
        %v1789 = vlog2.pop %v1745
        %v1790 = vmul.f32 %v1789, 0.6931472
        %v1791 = vlog2.pop %v1746
        %v1792 = vmul.f32 %v1791, 0.6931472
        %v1793 = vlog2.pop %v1747
        %v1794 = vmul.f32 %v1793, 0.6931472
        %v1795 = vlog2.pop %v1748
        %v1796 = vmul.f32 %v1795, 0.6931472
        %v1797 = vlog2.pop %v1749
        %v1798 = vmul.f32 %v1797, 0.6931472
        %v1799 = vlog2.pop %v1750
        %v1800 = vmul.f32 %v1799, 0.6931472
        %v1801 = vlog2.pop %v1751
        %v1802 = vmul.f32 %v1801, 0.6931472
        %v1803 = vlog2.pop %v1752
        %v1804 = vmul.f32 %v1803, 0.6931472
        %v1805 = vlog2.pop %v1753
        %v1806 = vmul.f32 %v1805, 0.6931472
        %v1807 = vlog2.pop %v1754
        %v1808 = vmul.f32 %v1807, 0.6931472
        %v1809 = vlog2.pop %v1755
        %v1810 = vmul.f32 %v1809, 0.6931472
        %v1811 = vlog2.pop %v1756
        %v1812 = vmul.f32 %v1811, 0.6931472
        %v1813 = vlog2.pop %v1757
        %v1814 = vmul.f32 %v1813, 0.6931472
        %v1815 = vlog2.pop %v1758
        %v1816 = vmul.f32 %v1815, 0.6931472
        %v1817 = vlog2.pop %v1759
        %v1818 = vmul.f32 %v1817, 0.6931472
        %v1819 = vlog2.pop %v1760
        %v1820 = vmul.f32 %v1819, 0.6931472
        %v1821 = vlog2.pop %v1761
        %v1822 = vmul.f32 %v1821, 0.6931472
        %v1823 = vlog2.pop %v1762
        %v1824 = vmul.f32 %v1823, 0.6931472
        %v1825 = vlog2.pop %v1763
        %v1826 = vmul.f32 %v1825, 0.6931472
        %v1827 = vlog2.pop %v1764
        %v1828 = vmul.f32 %v1827, 0.6931472
        %v1829 = vsub.f32 %v1670, %v1766
        %v1830 = vsub.f32 %v1672, %v1768
        %v1831 = vsub.f32 %v1674, %v1770
        %v1832 = vsub.f32 %v1676, %v1772
        %v1833 = vsub.f32 %v1678, %v1774
        %v1834 = vsub.f32 %v1680, %v1776
        %v1835 = vsub.f32 %v1682, %v1778
        %v1836 = vsub.f32 %v1684, %v1780
        %v1837 = vsub.f32 %v1686, %v1782
        %v1838 = vsub.f32 %v1688, %v1784
        %v1839 = vsub.f32 %v1690, %v1786
        %v1840 = vsub.f32 %v1692, %v1788
        %v1841 = vsub.f32 %v1694, %v1790
        %v1842 = vsub.f32 %v1696, %v1792
        %v1843 = vsub.f32 %v1698, %v1794
        %v1844 = vsub.f32 %v1700, %v1796
        %v1845 = vsub.f32 %v1702, %v1798
        %v1846 = vsub.f32 %v1704, %v1800
        %v1847 = vsub.f32 %v1706, %v1802
        %v1848 = vsub.f32 %v1708, %v1804
        %v1849 = vsub.f32 %v1710, %v1806
        %v1850 = vsub.f32 %v1712, %v1808
        %v1851 = vsub.f32 %v1714, %v1810
        %v1852 = vsub.f32 %v1716, %v1812
        %v1853 = vsub.f32 %v1718, %v1814
        %v1854 = vsub.f32 %v1720, %v1816
        %v1855 = vsub.f32 %v1722, %v1818
        %v1856 = vsub.f32 %v1724, %v1820
        %v1857 = vsub.f32 %v1726, %v1822
        %v1858 = vsub.f32 %v1728, %v1824
        %v1859 = vsub.f32 %v1730, %v1826
        %v1860 = vsub.f32 %v1732, %v1828
        %v1861 = vld [vmem:[#allocation2] sm:$0xff]
        %v1862 = vld [vmem:[#allocation2 + $0x8] sm:$0xff]
        %vm1863 = vcmask 130048
        %v1864 = vsel %vm1863, %v1829, 0.0
        %v1865 = vsel %vm1863, %v1831, 0.0
        %v1866 = vadd.f32 %v1864, %v1865
        %v1867 = vsel %vm1863, %v1833, 0.0
        %v1868 = vadd.f32 %v1866, %v1867
        %v1869 = vsel %vm1863, %v1835, 0.0
        %v1870 = vadd.f32 %v1868, %v1869
        %v1871 = vsel %vm1863, %v1837, 0.0
        %v1872 = vadd.f32 %v1870, %v1871
        %v1873 = vsel %vm1863, %v1839, 0.0
        %v1874 = vadd.f32 %v1872, %v1873
        %v1875 = vsel %vm1863, %v1841, 0.0
        %v1876 = vadd.f32 %v1874, %v1875
        %v1877 = vsel %vm1863, %v1843, 0.0
        %v1878 = vadd.f32 %v1876, %v1877
        %v1879 = vsel %vm1863, %v1845, 0.0
        %v1880 = vadd.f32 %v1878, %v1879
        %v1881 = vsel %vm1863, %v1847, 0.0
        %v1882 = vadd.f32 %v1880, %v1881
        %v1883 = vsel %vm1863, %v1849, 0.0
        %v1884 = vadd.f32 %v1882, %v1883
        %v1885 = vsel %vm1863, %v1851, 0.0
        %v1886 = vadd.f32 %v1884, %v1885
        %v1887 = vsel %vm1863, %v1853, 0.0
        %v1888 = vadd.f32 %v1886, %v1887
        %v1889 = vsel %vm1863, %v1855, 0.0
        %v1890 = vadd.f32 %v1888, %v1889
        %v1891 = vsel %vm1863, %v1857, 0.0
        %v1892 = vadd.f32 %v1890, %v1891
        %v1893 = vsel %vm1863, %v1859, 0.0
        %v1894 = vadd.f32 %v1892, %v1893
        %v1895 = vsel %vm1863, %v1830, 0.0
        %v1896 = vsel %vm1863, %v1832, 0.0
        %v1897 = vadd.f32 %v1895, %v1896
        %v1898 = vsel %vm1863, %v1834, 0.0
        %v1899 = vadd.f32 %v1897, %v1898
        %v1900 = vsel %vm1863, %v1836, 0.0
        %v1901 = vadd.f32 %v1899, %v1900
        %v1902 = vsel %vm1863, %v1838, 0.0
        %v1903 = vadd.f32 %v1901, %v1902
        %v1904 = vsel %vm1863, %v1840, 0.0
        %v1905 = vadd.f32 %v1903, %v1904
        %v1906 = vsel %vm1863, %v1842, 0.0
        %v1907 = vadd.f32 %v1905, %v1906
        %v1908 = vsel %vm1863, %v1844, 0.0
        %v1909 = vadd.f32 %v1907, %v1908
        %v1910 = vsel %vm1863, %v1846, 0.0
        %v1911 = vadd.f32 %v1909, %v1910
        %v1912 = vsel %vm1863, %v1848, 0.0
        %v1913 = vadd.f32 %v1911, %v1912
        %v1914 = vsel %vm1863, %v1850, 0.0
        %v1915 = vadd.f32 %v1913, %v1914
        %v1916 = vsel %vm1863, %v1852, 0.0
        %v1917 = vadd.f32 %v1915, %v1916
        %v1918 = vsel %vm1863, %v1854, 0.0
        %v1919 = vadd.f32 %v1917, %v1918
        %v1920 = vsel %vm1863, %v1856, 0.0
        %v1921 = vadd.f32 %v1919, %v1920
        %v1922 = vsel %vm1863, %v1858, 0.0
        %v1923 = vadd.f32 %v1921, %v1922
        %v1924 = vsel %vm1863, %v1860, 0.0
        %v1925 = vadd.f32 %v1923, %v1924
        %v1926 = vadd.f32 %v1861, %v1894
        %v1927 = vadd.f32 %v1862, %v1925
        %1928 = vst.msk [vmem:[#allocation2] sm:$0xff] %vm1863, %v1926
        %1929 = vst.msk [vmem:[#allocation2 + $0x8] sm:$0xff] %vm1863, %v1927
        // Predicated region
        $region65: #{tpu_custom_call.1} parent=39 // pred_check
          %p1930 = pneg %p413
        $region66: #{tpu_custom_call.1} parent=39 // pred_check_branch
          %1932 = sbr.rel (%p1930) target = $region68
        $region67: #{tpu_custom_call.1} parent=39 // pred_region
          %v1933 = vld [vmem:[%s330] sm:$0xff]
          %v1934 = vld [vmem:[%s330 + $0x8] sm:$0xff]
          %v1935 = vld [vmem:[%s339] sm:$0xff]
          %v1936 = vld [vmem:[%s339 + $0x8] sm:$0xff]
          %v1937 = vld [vmem:[%s348] sm:$0xff]
          %v1938 = vld [vmem:[%s348 + $0x8] sm:$0xff]
          %v1939 = vmul.f32 %v1933, %v1937
          %v1940 = vmul.f32 %v1934, %v1938
          %v1941 = vmul.f32 %v1939, %v1935
          %v1942 = vmul.f32 %v1940, %v1936
          %v1943 = vsel %vm1863, %v1941, 0.0
          %v1944 = vsel %vm1863, %v1942, 0.0
          %v1945 = vadd.f32 %v1943, %v1944
          %1946 = vadd.xlane.f32.xlu0 %v1945
          %v1947 = vpop.xlane.xlu0 %1946
          %v1948 = vrot.slane %v1947, 4
          %v1949 = vadd.f32 %v1947, %v1948
          %v1950 = vrot.slane %v1949, 2
          %v1951 = vadd.f32 %v1949, %v1950
          %v1952 = vrot.slane %v1951, 1
          %v1953 = vadd.f32 %v1951, %v1952
          %s1954 = vtos %v1953
          %v1955 = vsel %vm1863, %v1939, 0.0
          %v1956 = vsel %vm1863, %v1940, 0.0
          %v1957 = vadd.f32 %v1955, %v1956
          %1958 = vadd.xlane.f32.xlu0 %v1957
          %v1959 = vpop.xlane.xlu0 %1958
          %v1960 = vrot.slane %v1959, 4
          %v1961 = vadd.f32 %v1959, %v1960
          %v1962 = vrot.slane %v1961, 2
          %v1963 = vadd.f32 %v1961, %v1962
          %v1964 = vrot.slane %v1963, 1
          %v1965 = vadd.f32 %v1963, %v1964
          %s1966 = vtos %v1965
          %v1967 = vmul.f32 %v1935, %v1937
          %v1968 = vmul.f32 %v1936, %v1938
          %v1969 = vsel %vm1863, %v1967, 0.0
          %v1970 = vsel %vm1863, %v1968, 0.0
          %v1971 = vadd.f32 %v1969, %v1970
          %1972 = vadd.xlane.f32.xlu0 %v1971
          %v1973 = vpop.xlane.xlu0 %1972
          %v1974 = vrot.slane %v1973, 4
          %v1975 = vadd.f32 %v1973, %v1974
          %v1976 = vrot.slane %v1975, 2
          %v1977 = vadd.f32 %v1975, %v1976
          %v1978 = vrot.slane %v1977, 1
          %v1979 = vadd.f32 %v1977, %v1978
          %s1980 = vtos %v1979
          %v1981 = vld [vmem:[#allocation2] sm:$0xff]
          %v1982 = vld [vmem:[#allocation2 + $0x8] sm:$0xff]
          %v1983 = vmul.f32 %v1981, %v1939
          %v1984 = vmul.f32 %v1982, %v1940
          %v1985 = vsel %vm1863, %v1983, 0.0
          %v1986 = vsel %vm1863, %v1984, 0.0
          %v1987 = vadd.f32 %v1985, %v1986
          %1988 = vadd.xlane.f32.xlu0 %v1987
          %v1989 = vpop.xlane.xlu0 %1988
          %v1990 = vrot.slane %v1989, 4
          %v1991 = vadd.f32 %v1989, %v1990
          %v1992 = vrot.slane %v1991, 2
          %v1993 = vadd.f32 %v1991, %v1992
          %v1994 = vrot.slane %v1993, 1
          %v1995 = vadd.f32 %v1993, %v1994
          %s1996 = vtos %v1995
          %v1997 = vlaneseq
          %v1998 = vand.u32 %v1997, 127
          %vm1999 = vcmp.eq.s32.totalorder %v1998, 0
          %v2000 = vstv %s1954
          %v2001 = vsel %vm1999, %v2000, 0.0
          %vm2002 = vcmp.eq.s32.totalorder %v1998, 1
          %v2003 = vstv %s1966
          %v2004 = vsel %vm2002, %v2003, 0.0
          %v2005 = vadd.f32 %v2001, %v2004
          %vm2006 = vcmp.eq.s32.totalorder %v1998, 2
          %v2007 = vstv %s1980
          %v2008 = vsel %vm2006, %v2007, 0.0
          %v2009 = vadd.f32 %v2005, %v2008
          %vm2010 = vcmp.eq.s32.totalorder %v1998, 3
          %v2011 = vstv %s1996
          %v2012 = vsel %vm2010, %v2011, 0.0
          %v2013 = vadd.f32 %v2009, %v2012
          %vm2014 = vcmask 57344
          %2015 = vst.msk [vmem:[%s411] sm:$0x1] %vm2014, %v2013
        $region68: #{tpu_custom_call.1} parent=39 // pred_fallthru
          _
        %s2016 = sand.u32 %s180, 1
        %s2017 = scalar_lea.sflag [#allocation6], %s2016
        %s2018 = sand.u32 %s180, 1
        %s2019 = scalar_lea.vmem [#allocation13], %s2018
        // Predicated region
        $region69: #{tpu_custom_call.1} parent=39 // pred_check
          %p2020 = pneg %p190
        $region70: #{tpu_custom_call.1} parent=39 // pred_check_branch
          %2022 = sbr.rel (%p2020) target = $region72
        $region71: #{tpu_custom_call.1} parent=39 // pred_region
          %s2024 = ssub.s32 16, 16
          %2025 = vsyncadd %s2017, %s2024
          %s2026 = smul.addr %s32, 16
          %s2027 = scalar_lea.hbm %s5, %s2026
          %s2029 = sshll.u32 %s2019, 4
          %s2030 = int_to_ptr.vmem [resolvable:$true] %s2029
          %2032 = dma.vmem_to_hbm [thread:$0]  %s2030, 16, %s2027, %s2017
        $region72: #{tpu_custom_call.1} parent=39 // pred_fallthru
          _
      $region40: #{tpu_custom_call.1} parent=5 // pred_fallthru
        _
      %p2033 = scmp.le.s32.totalorder 2, %s23
      // Predicated region
      $region73: #{tpu_custom_call.1} parent=5 // pred_check
        %p2034 = pneg %p2033
      $region74: #{tpu_custom_call.1} parent=5 // pred_check_branch
        %2036 = sbr.rel (%p2034) target = $region76
      $region75: #{tpu_custom_call.1} parent=5 // pred_region
        %s2037 = ssub.s32 %s23, 2
        // Predicated region
        $region77: #{tpu_custom_call.1} parent=75 // pred_check
          %p2038 = pneg %p196
        $region78: #{tpu_custom_call.1} parent=75 // pred_check_branch
          %2040 = sbr.rel (%p2038) target = $region80
        $region79: #{tpu_custom_call.1} parent=75 // pred_region
          %s2041 = sand.u32 %s181, 1
          %s2042 = scalar_lea.sflag [#allocation6], %s2041
          %s2043 = sand.u32 %s181, 1
          %s2044 = scalar_lea.vmem [#allocation13], %s2043
          %2045 = dma.done %s2042, 16
        $region80: #{tpu_custom_call.1} parent=75 // pred_fallthru
          _
      $region76: #{tpu_custom_call.1} parent=5 // pred_fallthru
        _
    $region6: #{tpu_custom_call.1} parent=1 // loop_footer
      %s27 = sadd.s32 1, %s23
    $region7: #{tpu_custom_call.1} parent=1 // loop_footer_branch
      %22 = sbr.rel target = $region3
    $region8: #{tpu_custom_call.1} parent=1 // loop_exit
      _
    %2046 = vsyncpa [#allocation5], 1
    %s2047 = scalar_lea.sflag [#allocation5], 1
    %2048 = vsyncpa %s2047, 1
    %2049 = vsyncpa [#allocation8], 1
    %s2050 = scalar_lea.sflag [#allocation8], 1
    %2051 = vsyncpa %s2050, 1
    %2052 = vsyncpa [#allocation11], 1
    %s2053 = scalar_lea.sflag [#allocation11], 1
    %2054 = vsyncpa %s2053, 1
    %2055 = vsyncpa [#allocation6], 1
    %s2056 = scalar_lea.sflag [#allocation6], 1
    %2057 = vsyncpa %s2056, 1

</llo_original>
